<compile_context>
chip_gen: v6e
topology: v6e:2x2x1
jax: 0.10.0
libtpu: 0.0.40
codegen_flags: <defaults>
</compile_context>

<pallas_src>
import functools
import math
import numpy as np
import jax
import jax.numpy as jnp
from jax import lax
from jax.experimental import pallas as pl
from jax.experimental.pallas import tpu as pltpu

_VMEM_LIMIT = 48 * 1024 * 1024   # <= v7x 64 MiB physical; raise on v5e/v6e default
_LN_EPS = 1e-5                   # nn.LayerNorm default


def _ln(x, g, b, eps):
    """LayerNorm over the last dim (f32 math)."""
    mu = jnp.mean(x, axis=-1, keepdims=True)
    d = x - mu
    var = jnp.mean(d * d, axis=-1, keepdims=True)
    return d * lax.rsqrt(var + eps) * g + b


# ----------------------------------------------------------------------------
# The single fused kernel: input_fc+PE -> L encoder layers -> mean-pool + head
# ----------------------------------------------------------------------------

def _fused_forward_kernel(x_ref, pe_ref, inw_ref, inb_ref, outw_ref, outb_ref,
                          qkvw_ref, qkvb_ref, opw_ref, vec_ref,
                          f1w_ref, f1b_ref, f2w_ref,
                          o_ref, h_ref, *, num_heads, seq_len, eps):
    l = pl.program_id(1)
    n_layers = pl.num_programs(1)
    M, H = h_ref.shape                    # M = batch_block * seq_len
    S = seq_len
    b_blk = M // S
    hd = H // num_heads
    scale = 1.0 / math.sqrt(hd)

    # ---- prologue (layer 0 only): input_fc + positional encoding ----
    @pl.when(l == 0)
    def _():
        xb = x_ref[...].astype(jnp.bfloat16)                           # (M, D_in)
        y = jnp.dot(xb, inw_ref[...], preferred_element_type=jnp.float32)
        h_ref[...] = y + inb_ref[...] + pe_ref[...]                    # (M, H) f32

    h = h_ref[...]                                                     # residual, f32
    hb = h.astype(jnp.bfloat16)

    # ---- fused QKV projection: one (M,H)@(H,3H) MXU pass, bias hoisted ----
    qkv = jnp.dot(hb, qkvw_ref[0], preferred_element_type=jnp.float32) + qkvb_ref[0]

    vec = vec_ref[0]                       # (6, H): [opb, ln1_g, ln1_b, f2b, ln2_g, ln2_b]

    # ---- multi-head attention, batched over the batch-block dim per head ----
    attn_out = jnp.zeros((M, H), jnp.float32)
    for n in range(num_heads):
        qn = qkv[:, n * hd:(n + 1) * hd].reshape(b_blk, S, hd).astype(jnp.bfloat16)
        kn = qkv[:, H + n * hd:H + (n + 1) * hd].reshape(b_blk, S, hd).astype(jnp.bfloat16)
        vn = qkv[:, 2 * H + n * hd:2 * H + (n + 1) * hd].reshape(b_blk, S, hd).astype(jnp.bfloat16)
        s = jnp.einsum('bqd,bkd->bqk', qn, kn,
                       preferred_element_type=jnp.float32) * scale     # (b_blk, S, S)
        s = s - jnp.max(s, axis=-1, keepdims=True)
        p = jnp.exp(s)
        p = p * pl.reciprocal(jnp.sum(p, axis=-1, keepdims=True), approx=True)
        on = jnp.einsum('bqk,bkd->bqd', p.astype(jnp.bfloat16), vn,
                        preferred_element_type=jnp.float32)            # (b_blk, S, hd)
        # out-projection contribution of head n (sublane-aligned weight slab);
        # mathematically identical to concat(heads) @ W_out.
        attn_out = attn_out + jnp.dot(on.reshape(M, hd).astype(jnp.bfloat16),
                                      opw_ref[0, n],
                                      preferred_element_type=jnp.float32)
    attn_out = attn_out + vec[0:1]

    # ---- residual + LayerNorm 1 ----
    h1 = _ln(h + attn_out, vec[1:2], vec[2:3], eps)

    # ---- feed-forward (ReLU) + residual + LayerNorm 2 ----
    ff = jnp.dot(h1.astype(jnp.bfloat16), f1w_ref[0],
                 preferred_element_type=jnp.float32) + f1b_ref[0]
    ff = jnp.maximum(ff, 0.0)
    ff = jnp.dot(ff.astype(jnp.bfloat16), f2w_ref[0],
                 preferred_element_type=jnp.float32) + vec[3:4]
    h2 = _ln(h1 + ff, vec[4:5], vec[5:6], eps)

    h_ref[...] = h2                                                    # carry residual

    # ---- epilogue (last layer only): mean-pool over S + output linear ----
    @pl.when(l == n_layers - 1)
    def _():
        pooled = jnp.mean(h2.reshape(b_blk, S, H), axis=1)             # (b_blk, H)
        y = jnp.dot(pooled.astype(jnp.bfloat16), outw_ref[...],
                    preferred_element_type=jnp.float32) + outb_ref[...]
        o_ref[...] = y.astype(o_ref.dtype)


def _pick_batch_block(batch, seq, target_rows=256):
    """Fold batch elements into the matmul M dim (aim for ~256 MXU rows)."""
    best = 1
    for c in range(1, batch + 1):
        if batch % c == 0 and c * seq <= target_rows:
            best = c
    return best


@functools.partial(jax.jit, static_argnames=("num_heads",))
def transformer_model_forward(x, params, *, num_heads):
    B, S, D_in = x.shape
    L, H, _ = params["qkv_w"].shape
    O = params["out_w"].shape[1]
    F = params["f1_w"].shape[-1]

    b_blk = _pick_batch_block(B, S)
    num_b = B // b_blk
    M = b_blk * S

    # Layout plumbing only (tiny): flatten batch*seq rows, tile PE per block.
    x2 = x.reshape(B * S, D_in)
    pe_blk = jnp.tile(params["pe"][:S], (b_blk, 1))                    # (M, H)

    def layer_spec(arr):
        nd = arr.ndim
        return pl.BlockSpec((1,) + arr.shape[1:],
                            lambda b, l, nd=nd: (l,) + (0,) * (nd - 1))

    def const_spec(arr):
        nd = arr.ndim
        return pl.BlockSpec(arr.shape, lambda b, l, nd=nd: (0,) * nd)

    in_specs = [
        pl.BlockSpec((M, D_in), lambda b, l: (b, 0)),    # x rows for this block
        const_spec(pe_blk),                              # positional encoding
        const_spec(params["in_w"]), const_spec(params["in_b"]),
        const_spec(params["out_w"]), const_spec(params["out_b"]),
        layer_spec(params["qkv_w"]), layer_spec(params["qkv_b"]),
        layer_spec(params["op_w"]), layer_spec(params["vecs"]),
        layer_spec(params["f1_w"]), layer_spec(params["f1_b"]),
        layer_spec(params["f2_w"]),
    ]

    kernel = functools.partial(_fused_forward_kernel, num_heads=num_heads,
                               seq_len=S, eps=_LN_EPS)

    return pl.pallas_call(
        kernel,
        out_shape=jax.ShapeDtypeStruct((B, O), jnp.float32),
        grid=(num_b, L),
        in_specs=in_specs,
        out_specs=pl.BlockSpec((b_blk, O), lambda b, l: (b, 0)),
        scratch_shapes=[pltpu.VMEM((M, H), jnp.float32)],
        compiler_params=pltpu.CompilerParams(
            dimension_semantics=("parallel", "arbitrary"),
            vmem_limit_bytes=_VMEM_LIMIT),
    )(x2, pe_blk, params["in_w"], params["in_b"], params["out_w"], params["out_b"],
      params["qkv_w"], params["qkv_b"], params["op_w"], params["vecs"],
      params["f1_w"], params["f1_b"], params["f2_w"])


# ----------------------------------------------------------------------------
# Deterministic parameter construction (torch-equivalent layout) + kernel prep
# ----------------------------------------------------------------------------

def make_positional_encoding(max_len, d_model):
    position = np.arange(max_len, dtype=np.float32)[:, None]
    div_term = np.exp(np.arange(0, d_model, 2, dtype=np.float32)
                      * (-np.log(10000.0) / d_model))
    pe = np.zeros((max_len, d_model), dtype=np.float32)
    pe[:, 0::2] = np.sin(position * div_term)
    pe[:, 1::2] = np.cos(position * div_term)
    return jnp.asarray(pe)


def init_params(key, *, input_size, output_size, hidden_size, num_layers,
                num_heads, dim_feedforward):
    """Weights stored as (fan_in, fan_out), i.e. already transposed vs. torch."""
    H, F = hidden_size, dim_feedforward
    scale = 0.02

    def dense(k, fan_in, fan_out):
        kw, kb = jax.random.split(k)
        w = scale * jax.random.normal(kw, (fan_in, fan_out), jnp.float32)
        b = scale * jax.random.normal(kb, (fan_out,), jnp.float32)
        return w, b

    keys = jax.random.split(key, 2 + num_layers)
    in_w, in_b = dense(keys[0], input_size, H)
    out_w, out_b = dense(keys[1], H, output_size)

    layers = []
    for li in range(num_layers):
        lk = jax.random.split(keys[2 + li], 4)
        ipw, ipb = dense(lk[0], H, 3 * H)
        opw, opb = dense(lk[1], H, H)
        f1w, f1b = dense(lk[2], H, F)
        f2w, f2b = dense(lk[3], F, H)
        layers.append(dict(
            in_proj_w=ipw, in_proj_b=ipb,
            out_proj_w=opw, out_proj_b=opb,
            ln1_g=jnp.ones((H,), jnp.float32), ln1_b=jnp.zeros((H,), jnp.float32),
            ff1_w=f1w, ff1_b=f1b,
            ff2_w=f2w, ff2_b=f2b,
            ln2_g=jnp.ones((H,), jnp.float32), ln2_b=jnp.zeros((H,), jnp.float32),
        ))

    # max_len tied to input_size*1.2 to mirror the PyTorch module exactly.
    max_len = int(input_size * 1.2)
    return dict(
        input_fc_w=in_w, input_fc_b=in_b,
        out_w=out_w, out_b=out_b,
        pe=make_positional_encoding(max_len, H),
        num_heads=num_heads,
        layers=layers,
    )


def prepare_params(raw):
    """Stack per-layer weights along a leading layer dim; cast matmul weights to bf16."""
    num_heads = raw["num_heads"]
    layers = raw["layers"]
    H = raw["out_w"].shape[0]
    hd = H // num_heads

    qkv_w = jnp.stack([l["in_proj_w"] for l in layers]).astype(jnp.bfloat16)        # (L,H,3H)
    qkv_b = jnp.stack([l["in_proj_b"].reshape(1, -1) for l in layers])               # (L,1,3H)
    # out-proj weight split head-major along fan-in (sublane dim, lane-dense last dim H)
    op_w = jnp.stack([l["out_proj_w"].reshape(num_heads, hd, H)
                      for l in layers]).astype(jnp.bfloat16)                          # (L,nh,hd,H)
    vecs = jnp.stack([jnp.stack([l["out_proj_b"], l["ln1_g"], l["ln1_b"],
                                 l["ff2_b"], l["ln2_g"], l["ln2_b"]])
                      for l in layers])                                               # (L,6,H)
    f1_w = jnp.stack([l["ff1_w"] for l in layers]).astype(jnp.bfloat16)               # (L,H,F)
    f1_b = jnp.stack([l["ff1_b"].reshape(1, -1) for l in layers])                     # (L,1,F)
    f2_w = jnp.stack([l["ff2_w"] for l in layers]).astype(jnp.bfloat16)               # (L,F,H)

    params = dict(
        in_w=raw["input_fc_w"].astype(jnp.bfloat16),
        in_b=raw["input_fc_b"].reshape(1, -1),
        out_w=raw["out_w"].astype(jnp.bfloat16),
        out_b=raw["out_b"].reshape(1, -1),
        pe=raw["pe"],
        qkv_w=qkv_w, qkv_b=qkv_b, op_w=op_w, vecs=vecs,
        f1_w=f1_w, f1_b=f1_b, f2_w=f2_w,
    )
    return params, num_heads


# ----------------------------------------------------------------------------
# Pure-JAX f32 reference (torch-equivalent math) for a sanity check
# ----------------------------------------------------------------------------

def _ln_ref(x, g, b):
    mu = x.mean(-1, keepdims=True)
    var = ((x - mu) ** 2).mean(-1, keepdims=True)
    return (x - mu) / jnp.sqrt(var + _LN_EPS) * g + b


def reference_forward(x, raw):
    B, S, _ = x.shape
    H = raw["input_fc_w"].shape[1]
    nh = raw["num_heads"]
    hd = H // nh
    h = x @ raw["input_fc_w"] + raw["input_fc_b"] + raw["pe"][:S][None]
    for lyr in raw["layers"]:
        qkv = h @ lyr["in_proj_w"] + lyr["in_proj_b"]
        q, k, v = jnp.split(qkv, 3, axis=-1)
        heads = lambda t: t.reshape(B, S, nh, hd).transpose(0, 2, 1, 3)
        q, k, v = heads(q), heads(k), heads(v)
        s = jnp.einsum('bnqd,bnkd->bnqk', q, k) / np.sqrt(hd)
        p = jax.nn.softmax(s, axis=-1)
        o = jnp.einsum('bnqk,bnkd->bnqd', p, v).transpose(0, 2, 1, 3).reshape(B, S, H)
        o = o @ lyr["out_proj_w"] + lyr["out_proj_b"]
        h = _ln_ref(h + o, lyr["ln1_g"], lyr["ln1_b"])
        ff = jax.nn.relu(h @ lyr["ff1_w"] + lyr["ff1_b"]) @ lyr["ff2_w"] + lyr["ff2_b"]
        h = _ln_ref(h + ff, lyr["ln2_g"], lyr["ln2_b"])
    return h.mean(axis=1) @ raw["out_w"] + raw["out_b"]


# ----------------------------------------------------------------------------

if __name__ == "__main__":
    # Small, forward-consistent shapes.
    B, S = 2, 8
    INPUT_SIZE, OUTPUT_SIZE = 16, 8
    HIDDEN, LAYERS, HEADS, DFF = 32, 2, 4, 64

    key = jax.random.PRNGKey(0)
    kx, kp = jax.random.split(key)

    raw_params = init_params(kp, input_size=INPUT_SIZE, output_size=OUTPUT_SIZE,
                             hidden_size=HIDDEN, num_layers=LAYERS,
                             num_heads=HEADS, dim_feedforward=DFF)
    kparams, num_heads = prepare_params(raw_params)

    x = jax.random.normal(kx, (B, S, INPUT_SIZE), jnp.float32)

    out = transformer_model_forward(x, kparams, num_heads=num_heads)
    out = jax.block_until_ready(out)

    assert out.shape == (B, OUTPUT_SIZE)
    assert bool(jnp.all(jnp.isfinite(out)))

    # Sanity check against the f32 pure-JAX reference (bf16 matmuls -> loose tol).
    ref = reference_forward(x, raw_params)
    max_err = float(jnp.max(jnp.abs(out - ref)))
    assert max_err < 0.1, f"mismatch vs reference: max abs err {max_err}"

    print("KERNEL_OK")
</pallas_src>

<mosaic_0001>
module attributes {stable_mosaic.version = 11 : i64} {
  func.func @_fused_forward_kernel(%arg0: i32, %arg1: i32, %arg2: memref<16x16xf32, #tpu.memory_space<vmem>>, %arg3: memref<16x32xf32, #tpu.memory_space<vmem>>, %arg4: memref<16x32xbf16, #tpu.memory_space<vmem>>, %arg5: memref<1x32xf32, #tpu.memory_space<vmem>>, %arg6: memref<32x8xbf16, #tpu.memory_space<vmem>>, %arg7: memref<1x8xf32, #tpu.memory_space<vmem>>, %arg8: memref<1x32x96xbf16, #tpu.memory_space<vmem>>, %arg9: memref<1x1x96xf32, #tpu.memory_space<vmem>>, %arg10: memref<1x4x8x32xbf16, #tpu.memory_space<vmem>>, %arg11: memref<1x6x32xf32, #tpu.memory_space<vmem>>, %arg12: memref<1x32x64xbf16, #tpu.memory_space<vmem>>, %arg13: memref<1x1x64xf32, #tpu.memory_space<vmem>>, %arg14: memref<1x64x32xbf16, #tpu.memory_space<vmem>>, %arg15: memref<2x8xf32, #tpu.memory_space<vmem>>, %arg16: memref<16x32xf32, #tpu.memory_space<vmem>>) attributes {dimension_semantics = [#tpu.dimension_semantics<parallel>, #tpu.dimension_semantics<arbitrary>], iteration_bounds = array<i64: 1, 2>, scalar_prefetch = 0 : i64, scratch_operands = 1 : i64, tpu.core_type = #tpu.core_type<tc>, window_params = [{transform_indices = @transform_0, window_bounds = array<i64: 16, 16>}, {pipeline_mode = #tpu.pipeline_mode<synchronous>, transform_indices = @transform_1, window_bounds = array<i64: 16, 32>}, {pipeline_mode = #tpu.pipeline_mode<synchronous>, transform_indices = @transform_2, window_bounds = array<i64: 16, 32>}, {pipeline_mode = #tpu.pipeline_mode<synchronous>, transform_indices = @transform_3, window_bounds = array<i64: 1, 32>}, {pipeline_mode = #tpu.pipeline_mode<synchronous>, transform_indices = @transform_4, window_bounds = array<i64: 32, 8>}, {pipeline_mode = #tpu.pipeline_mode<synchronous>, transform_indices = @transform_5, window_bounds = array<i64: 1, 8>}, {transform_indices = @transform_6, window_bounds = array<i64: 1, 32, 96>}, {transform_indices = @transform_7, window_bounds = array<i64: 1, 1, 96>}, {transform_indices = @transform_8, window_bounds = array<i64: 1, 4, 8, 32>}, {transform_indices = @transform_9, window_bounds = array<i64: 1, 6, 32>}, {transform_indices = @transform_10, window_bounds = array<i64: 1, 32, 64>}, {transform_indices = @transform_11, window_bounds = array<i64: 1, 1, 64>}, {transform_indices = @transform_12, window_bounds = array<i64: 1, 64, 32>}, {transform_indices = @transform_13, window_bounds = array<i64: 2, 8>}]} {
    %c0_i32 = arith.constant 0 : i32
    %0 = arith.cmpi eq, %arg1, %c0_i32 : i32
    %1 = arith.extui %0 : i1 to i32
    %c0_i32_0 = arith.constant 0 : i32
    %2 = arith.cmpi ne, %1, %c0_i32_0 : i32
    scf.if %2 {
      %c0_74 = arith.constant 0 : index
      %c0_75 = arith.constant 0 : index
      %205 = vector.load %arg2[%c0_74, %c0_75] : memref<16x16xf32, #tpu.memory_space<vmem>>, vector<16x16xf32>
      %206 = arith.truncf %205 : vector<16x16xf32> to vector<16x16xbf16>
      %c0_76 = arith.constant 0 : index
      %c0_77 = arith.constant 0 : index
      %207 = vector.load %arg4[%c0_76, %c0_77] : memref<16x32xbf16, #tpu.memory_space<vmem>>, vector<16x32xbf16>
      %cst_78 = arith.constant dense<0.000000e+00> : vector<16x32xf32>
      %208 = tpu.matmul %206, %207, %cst_78 {dimension_numbers = #tpu.dot_dimension_numbers<[1], [0], [0], [1], [0, 0, 1, 1], [], []>} : vector<16x16xbf16>, vector<16x32xbf16>, vector<16x32xf32> -> vector<16x32xf32>
      %c0_79 = arith.constant 0 : index
      %c0_80 = arith.constant 0 : index
      %209 = vector.load %arg5[%c0_79, %c0_80] : memref<1x32xf32, #tpu.memory_space<vmem>>, vector<1x32xf32>
      %210 = vector.broadcast %209 : vector<1x32xf32> to vector<16x32xf32>
      %211 = arith.addf %208, %210 : vector<16x32xf32>
      %c0_81 = arith.constant 0 : index
      %c0_82 = arith.constant 0 : index
      %212 = vector.load %arg3[%c0_81, %c0_82] : memref<16x32xf32, #tpu.memory_space<vmem>>, vector<16x32xf32>
      %213 = arith.addf %211, %212 : vector<16x32xf32>
      %c0_83 = arith.constant 0 : index
      %c0_84 = arith.constant 0 : index
      %214 = vector.load %arg16[%c0_83, %c0_84] : memref<16x32xf32, #tpu.memory_space<vmem>>, vector<16x32xf32>
      tpu.vector_store %arg16[%c0_83, %c0_84], %213 {strides = array<i32>} : memref<16x32xf32, #tpu.memory_space<vmem>>, vector<16x32xf32>,
    } else {
    }
    %c0 = arith.constant 0 : index
    %c0_1 = arith.constant 0 : index
    %3 = vector.load %arg16[%c0, %c0_1] : memref<16x32xf32, #tpu.memory_space<vmem>>, vector<16x32xf32>
    %4 = arith.truncf %3 : vector<16x32xf32> to vector<16x32xbf16>
    %c0_2 = arith.constant 0 : index
    %c0_3 = arith.constant 0 : index
    %c0_4 = arith.constant 0 : index
    %5 = vector.load %arg8[%c0_2, %c0_3, %c0_4] : memref<1x32x96xbf16, #tpu.memory_space<vmem>>, vector<1x32x96xbf16>
    %6 = vector.shape_cast %5 : vector<1x32x96xbf16> to vector<32x96xbf16>
    %cst = arith.constant dense<0.000000e+00> : vector<16x96xf32>
    %7 = tpu.matmul %4, %6, %cst {dimension_numbers = #tpu.dot_dimension_numbers<[1], [0], [0], [1], [0, 0, 1, 1], [], []>} : vector<16x32xbf16>, vector<32x96xbf16>, vector<16x96xf32> -> vector<16x96xf32>
    %c0_5 = arith.constant 0 : index
    %c0_6 = arith.constant 0 : index
    %c0_7 = arith.constant 0 : index
    %8 = vector.load %arg9[%c0_5, %c0_6, %c0_7] : memref<1x1x96xf32, #tpu.memory_space<vmem>>, vector<1x1x96xf32>
    %9 = vector.shape_cast %8 : vector<1x1x96xf32> to vector<1x96xf32>
    %10 = vector.broadcast %9 : vector<1x96xf32> to vector<16x96xf32>
    %11 = arith.addf %7, %10 : vector<16x96xf32>
    %c0_8 = arith.constant 0 : index
    %c0_9 = arith.constant 0 : index
    %c0_10 = arith.constant 0 : index
    %12 = vector.load %arg11[%c0_8, %c0_9, %c0_10] : memref<1x6x32xf32, #tpu.memory_space<vmem>>, vector<1x6x32xf32>
    %13 = vector.shape_cast %12 : vector<1x6x32xf32> to vector<6x32xf32>
    %cst_11 = arith.constant 0.000000e+00 : f32
    %14 = vector.broadcast %cst_11 : f32 to vector<16x32xf32>
    %15 = vector.extract_strided_slice %11 {offsets = [0, 0], sizes = [16, 8], strides = [1, 1]} : vector<16x96xf32> to vector<16x8xf32>
    %16 = vector.shape_cast %15 : vector<16x8xf32> to vector<2x8x8xf32>
    %17 = arith.truncf %16 : vector<2x8x8xf32> to vector<2x8x8xbf16>
    %18 = vector.extract_strided_slice %11 {offsets = [0, 32], sizes = [16, 8], strides = [1, 1]} : vector<16x96xf32> to vector<16x8xf32>
    %19 = vector.shape_cast %18 : vector<16x8xf32> to vector<2x8x8xf32>
    %20 = arith.truncf %19 : vector<2x8x8xf32> to vector<2x8x8xbf16>
    %21 = vector.extract_strided_slice %11 {offsets = [0, 64], sizes = [16, 8], strides = [1, 1]} : vector<16x96xf32> to vector<16x8xf32>
    %22 = vector.shape_cast %21 : vector<16x8xf32> to vector<2x8x8xf32>
    %23 = arith.truncf %22 : vector<2x8x8xf32> to vector<2x8x8xbf16>
    "tpu.trace_start"() <{level = 10 : i32, message = "bqd,bkd->bqk"}> : () -> ()
    %cst_12 = arith.constant dense<0.000000e+00> : vector<2x8x8xf32>
    %24 = tpu.matmul %17, %20, %cst_12 {dimension_numbers = #tpu.dot_dimension_numbers<[2], [2], [1], [1], [0, 0, 0, 1, 1, 1], [0], [0]>} : vector<2x8x8xbf16>, vector<2x8x8xbf16>, vector<2x8x8xf32> -> vector<2x8x8xf32>
    "tpu.trace_stop"() : () -> ()
    %cst_13 = arith.constant 0.353553385 : f32
    %25 = vector.broadcast %cst_13 : f32 to vector<2x8x8xf32>
    %26 = arith.mulf %24, %25 : vector<2x8x8xf32>
    %cst_14 = arith.constant dense<0xFF800000> : vector<2x8xf32>
    %27 = vector.multi_reduction <maximumf>, %26, %cst_14 [2] : vector<2x8x8xf32> to vector<2x8xf32>
    %28 = vector.shape_cast %27 : vector<2x8xf32> to vector<2x8x1xf32>
    %29 = vector.broadcast %28 : vector<2x8x1xf32> to vector<2x8x8xf32>
    %30 = arith.subf %26, %29 : vector<2x8x8xf32>
    %31 = math.exp %30 : vector<2x8x8xf32>
    %cst_15 = arith.constant dense<0.000000e+00> : vector<2x8xf32>
    %32 = vector.multi_reduction <add>, %31, %cst_15 [2] : vector<2x8x8xf32> to vector<2x8xf32>
    %33 = vector.shape_cast %32 : vector<2x8xf32> to vector<2x8x1xf32>
    %34 = tpu.reciprocal %33 {approx = true} : vector<2x8x1xf32> -> vector<2x8x1xf32>
    %35 = vector.broadcast %34 : vector<2x8x1xf32> to vector<2x8x8xf32>
    %36 = arith.mulf %31, %35 : vector<2x8x8xf32>
    %37 = arith.truncf %36 : vector<2x8x8xf32> to vector<2x8x8xbf16>
    "tpu.trace_start"() <{level = 10 : i32, message = "bqk,bkd->bqd"}> : () -> ()
    %cst_16 = arith.constant dense<0.000000e+00> : vector<2x8x8xf32>
    %38 = tpu.matmul %37, %23, %cst_16 {dimension_numbers = #tpu.dot_dimension_numbers<[2], [1], [1], [2], [0, 0, 0, 1, 1, 2], [0], [0]>} : vector<2x8x8xbf16>, vector<2x8x8xbf16>, vector<2x8x8xf32> -> vector<2x8x8xf32>
    "tpu.trace_stop"() : () -> ()
    %39 = vector.shape_cast %38 : vector<2x8x8xf32> to vector<16x8xf32>
    %40 = arith.truncf %39 : vector<16x8xf32> to vector<16x8xbf16>
    %c0_17 = arith.constant 0 : index
    %c0_18 = arith.constant 0 : index
    %c0_19 = arith.constant 0 : index
    %c0_20 = arith.constant 0 : index
    %41 = vector.load %arg10[%c0_17, %c0_18, %c0_19, %c0_20] : memref<1x4x8x32xbf16, #tpu.memory_space<vmem>>, vector<1x1x8x32xbf16>
    %42 = vector.shape_cast %41 : vector<1x1x8x32xbf16> to vector<8x32xbf16>
    %cst_21 = arith.constant dense<0.000000e+00> : vector<16x32xf32>
    %43 = tpu.matmul %40, %42, %cst_21 {dimension_numbers = #tpu.dot_dimension_numbers<[1], [0], [0], [1], [0, 0, 1, 1], [], []>} : vector<16x8xbf16>, vector<8x32xbf16>, vector<16x32xf32> -> vector<16x32xf32>
    %44 = arith.addf %14, %43 : vector<16x32xf32>
    %45 = vector.extract_strided_slice %11 {offsets = [0, 8], sizes = [16, 8], strides = [1, 1]} : vector<16x96xf32> to vector<16x8xf32>
    %46 = vector.shape_cast %45 : vector<16x8xf32> to vector<2x8x8xf32>
    %47 = arith.truncf %46 : vector<2x8x8xf32> to vector<2x8x8xbf16>
    %48 = vector.extract_strided_slice %11 {offsets = [0, 40], sizes = [16, 8], strides = [1, 1]} : vector<16x96xf32> to vector<16x8xf32>
    %49 = vector.shape_cast %48 : vector<16x8xf32> to vector<2x8x8xf32>
    %50 = arith.truncf %49 : vector<2x8x8xf32> to vector<2x8x8xbf16>
    %51 = vector.extract_strided_slice %11 {offsets = [0, 72], sizes = [16, 8], strides = [1, 1]} : vector<16x96xf32> to vector<16x8xf32>
    %52 = vector.shape_cast %51 : vector<16x8xf32> to vector<2x8x8xf32>
    %53 = arith.truncf %52 : vector<2x8x8xf32> to vector<2x8x8xbf16>
    "tpu.trace_start"() <{level = 10 : i32, message = "bqd,bkd->bqk"}> : () -> ()
    %cst_22 = arith.constant dense<0.000000e+00> : vector<2x8x8xf32>
    %54 = tpu.matmul %47, %50, %cst_22 {dimension_numbers = #tpu.dot_dimension_numbers<[2], [2], [1], [1], [0, 0, 0, 1, 1, 1], [0], [0]>} : vector<2x8x8xbf16>, vector<2x8x8xbf16>, vector<2x8x8xf32> -> vector<2x8x8xf32>
    "tpu.trace_stop"() : () -> ()
    %cst_23 = arith.constant 0.353553385 : f32
    %55 = vector.broadcast %cst_23 : f32 to vector<2x8x8xf32>
    %56 = arith.mulf %54, %55 : vector<2x8x8xf32>
    %cst_24 = arith.constant dense<0xFF800000> : vector<2x8xf32>
    %57 = vector.multi_reduction <maximumf>, %56, %cst_24 [2] : vector<2x8x8xf32> to vector<2x8xf32>
    %58 = vector.shape_cast %57 : vector<2x8xf32> to vector<2x8x1xf32>
    %59 = vector.broadcast %58 : vector<2x8x1xf32> to vector<2x8x8xf32>
    %60 = arith.subf %56, %59 : vector<2x8x8xf32>
    %61 = math.exp %60 : vector<2x8x8xf32>
    %cst_25 = arith.constant dense<0.000000e+00> : vector<2x8xf32>
    %62 = vector.multi_reduction <add>, %61, %cst_25 [2] : vector<2x8x8xf32> to vector<2x8xf32>
    %63 = vector.shape_cast %62 : vector<2x8xf32> to vector<2x8x1xf32>
    %64 = tpu.reciprocal %63 {approx = true} : vector<2x8x1xf32> -> vector<2x8x1xf32>
    %65 = vector.broadcast %64 : vector<2x8x1xf32> to vector<2x8x8xf32>
    %66 = arith.mulf %61, %65 : vector<2x8x8xf32>
    %67 = arith.truncf %66 : vector<2x8x8xf32> to vector<2x8x8xbf16>
    "tpu.trace_start"() <{level = 10 : i32, message = "bqk,bkd->bqd"}> : () -> ()
    %cst_26 = arith.constant dense<0.000000e+00> : vector<2x8x8xf32>
    %68 = tpu.matmul %67, %53, %cst_26 {dimension_numbers = #tpu.dot_dimension_numbers<[2], [1], [1], [2], [0, 0, 0, 1, 1, 2], [0], [0]>} : vector<2x8x8xbf16>, vector<2x8x8xbf16>, vector<2x8x8xf32> -> vector<2x8x8xf32>
    "tpu.trace_stop"() : () -> ()
    %69 = vector.shape_cast %68 : vector<2x8x8xf32> to vector<16x8xf32>
    %70 = arith.truncf %69 : vector<16x8xf32> to vector<16x8xbf16>
    %c0_27 = arith.constant 0 : index
    %c1 = arith.constant 1 : index
    %c0_28 = arith.constant 0 : index
    %c0_29 = arith.constant 0 : index
    %71 = vector.load %arg10[%c0_27, %c1, %c0_28, %c0_29] : memref<1x4x8x32xbf16, #tpu.memory_space<vmem>>, vector<1x1x8x32xbf16>
    %72 = vector.shape_cast %71 : vector<1x1x8x32xbf16> to vector<8x32xbf16>
    %cst_30 = arith.constant dense<0.000000e+00> : vector<16x32xf32>
    %73 = tpu.matmul %70, %72, %cst_30 {dimension_numbers = #tpu.dot_dimension_numbers<[1], [0], [0], [1], [0, 0, 1, 1], [], []>} : vector<16x8xbf16>, vector<8x32xbf16>, vector<16x32xf32> -> vector<16x32xf32>
    %74 = arith.addf %44, %73 : vector<16x32xf32>
    %75 = vector.extract_strided_slice %11 {offsets = [0, 16], sizes = [16, 8], strides = [1, 1]} : vector<16x96xf32> to vector<16x8xf32>
    %76 = vector.shape_cast %75 : vector<16x8xf32> to vector<2x8x8xf32>
    %77 = arith.truncf %76 : vector<2x8x8xf32> to vector<2x8x8xbf16>
    %78 = vector.extract_strided_slice %11 {offsets = [0, 48], sizes = [16, 8], strides = [1, 1]} : vector<16x96xf32> to vector<16x8xf32>
    %79 = vector.shape_cast %78 : vector<16x8xf32> to vector<2x8x8xf32>
    %80 = arith.truncf %79 : vector<2x8x8xf32> to vector<2x8x8xbf16>
    %81 = vector.extract_strided_slice %11 {offsets = [0, 80], sizes = [16, 8], strides = [1, 1]} : vector<16x96xf32> to vector<16x8xf32>
    %82 = vector.shape_cast %81 : vector<16x8xf32> to vector<2x8x8xf32>
    %83 = arith.truncf %82 : vector<2x8x8xf32> to vector<2x8x8xbf16>
    "tpu.trace_start"() <{level = 10 : i32, message = "bqd,bkd->bqk"}> : () -> ()
    %cst_31 = arith.constant dense<0.000000e+00> : vector<2x8x8xf32>
    %84 = tpu.matmul %77, %80, %cst_31 {dimension_numbers = #tpu.dot_dimension_numbers<[2], [2], [1], [1], [0, 0, 0, 1, 1, 1], [0], [0]>} : vector<2x8x8xbf16>, vector<2x8x8xbf16>, vector<2x8x8xf32> -> vector<2x8x8xf32>
    "tpu.trace_stop"() : () -> ()
    %cst_32 = arith.constant 0.353553385 : f32
    %85 = vector.broadcast %cst_32 : f32 to vector<2x8x8xf32>
    %86 = arith.mulf %84, %85 : vector<2x8x8xf32>
    %cst_33 = arith.constant dense<0xFF800000> : vector<2x8xf32>
    %87 = vector.multi_reduction <maximumf>, %86, %cst_33 [2] : vector<2x8x8xf32> to vector<2x8xf32>
    %88 = vector.shape_cast %87 : vector<2x8xf32> to vector<2x8x1xf32>
    %89 = vector.broadcast %88 : vector<2x8x1xf32> to vector<2x8x8xf32>
    %90 = arith.subf %86, %89 : vector<2x8x8xf32>
    %91 = math.exp %90 : vector<2x8x8xf32>
    %cst_34 = arith.constant dense<0.000000e+00> : vector<2x8xf32>
    %92 = vector.multi_reduction <add>, %91, %cst_34 [2] : vector<2x8x8xf32> to vector<2x8xf32>
    %93 = vector.shape_cast %92 : vector<2x8xf32> to vector<2x8x1xf32>
    %94 = tpu.reciprocal %93 {approx = true} : vector<2x8x1xf32> -> vector<2x8x1xf32>
    %95 = vector.broadcast %94 : vector<2x8x1xf32> to vector<2x8x8xf32>
    %96 = arith.mulf %91, %95 : vector<2x8x8xf32>
    %97 = arith.truncf %96 : vector<2x8x8xf32> to vector<2x8x8xbf16>
    "tpu.trace_start"() <{level = 10 : i32, message = "bqk,bkd->bqd"}> : () -> ()
    %cst_35 = arith.constant dense<0.000000e+00> : vector<2x8x8xf32>
    %98 = tpu.matmul %97, %83, %cst_35 {dimension_numbers = #tpu.dot_dimension_numbers<[2], [1], [1], [2], [0, 0, 0, 1, 1, 2], [0], [0]>} : vector<2x8x8xbf16>, vector<2x8x8xbf16>, vector<2x8x8xf32> -> vector<2x8x8xf32>
    "tpu.trace_stop"() : () -> ()
    %99 = vector.shape_cast %98 : vector<2x8x8xf32> to vector<16x8xf32>
    %100 = arith.truncf %99 : vector<16x8xf32> to vector<16x8xbf16>
    %c0_36 = arith.constant 0 : index
    %c2 = arith.constant 2 : index
    %c0_37 = arith.constant 0 : index
    %c0_38 = arith.constant 0 : index
    %101 = vector.load %arg10[%c0_36, %c2, %c0_37, %c0_38] : memref<1x4x8x32xbf16, #tpu.memory_space<vmem>>, vector<1x1x8x32xbf16>
    %102 = vector.shape_cast %101 : vector<1x1x8x32xbf16> to vector<8x32xbf16>
    %cst_39 = arith.constant dense<0.000000e+00> : vector<16x32xf32>
    %103 = tpu.matmul %100, %102, %cst_39 {dimension_numbers = #tpu.dot_dimension_numbers<[1], [0], [0], [1], [0, 0, 1, 1], [], []>} : vector<16x8xbf16>, vector<8x32xbf16>, vector<16x32xf32> -> vector<16x32xf32>
    %104 = arith.addf %74, %103 : vector<16x32xf32>
    %105 = vector.extract_strided_slice %11 {offsets = [0, 24], sizes = [16, 8], strides = [1, 1]} : vector<16x96xf32> to vector<16x8xf32>
    %106 = vector.shape_cast %105 : vector<16x8xf32> to vector<2x8x8xf32>
    %107 = arith.truncf %106 : vector<2x8x8xf32> to vector<2x8x8xbf16>
    %108 = vector.extract_strided_slice %11 {offsets = [0, 56], sizes = [16, 8], strides = [1, 1]} : vector<16x96xf32> to vector<16x8xf32>
    %109 = vector.shape_cast %108 : vector<16x8xf32> to vector<2x8x8xf32>
    %110 = arith.truncf %109 : vector<2x8x8xf32> to vector<2x8x8xbf16>
    %111 = vector.extract_strided_slice %11 {offsets = [0, 88], sizes = [16, 8], strides = [1, 1]} : vector<16x96xf32> to vector<16x8xf32>
    %112 = vector.shape_cast %111 : vector<16x8xf32> to vector<2x8x8xf32>
    %113 = arith.truncf %112 : vector<2x8x8xf32> to vector<2x8x8xbf16>
    "tpu.trace_start"() <{level = 10 : i32, message = "bqd,bkd->bqk"}> : () -> ()
    %cst_40 = arith.constant dense<0.000000e+00> : vector<2x8x8xf32>
    %114 = tpu.matmul %107, %110, %cst_40 {dimension_numbers = #tpu.dot_dimension_numbers<[2], [2], [1], [1], [0, 0, 0, 1, 1, 1], [0], [0]>} : vector<2x8x8xbf16>, vector<2x8x8xbf16>, vector<2x8x8xf32> -> vector<2x8x8xf32>
    "tpu.trace_stop"() : () -> ()
    %cst_41 = arith.constant 0.353553385 : f32
    %115 = vector.broadcast %cst_41 : f32 to vector<2x8x8xf32>
    %116 = arith.mulf %114, %115 : vector<2x8x8xf32>
    %cst_42 = arith.constant dense<0xFF800000> : vector<2x8xf32>
    %117 = vector.multi_reduction <maximumf>, %116, %cst_42 [2] : vector<2x8x8xf32> to vector<2x8xf32>
    %118 = vector.shape_cast %117 : vector<2x8xf32> to vector<2x8x1xf32>
    %119 = vector.broadcast %118 : vector<2x8x1xf32> to vector<2x8x8xf32>
    %120 = arith.subf %116, %119 : vector<2x8x8xf32>
    %121 = math.exp %120 : vector<2x8x8xf32>
    %cst_43 = arith.constant dense<0.000000e+00> : vector<2x8xf32>
    %122 = vector.multi_reduction <add>, %121, %cst_43 [2] : vector<2x8x8xf32> to vector<2x8xf32>
    %123 = vector.shape_cast %122 : vector<2x8xf32> to vector<2x8x1xf32>
    %124 = tpu.reciprocal %123 {approx = true} : vector<2x8x1xf32> -> vector<2x8x1xf32>
    %125 = vector.broadcast %124 : vector<2x8x1xf32> to vector<2x8x8xf32>
    %126 = arith.mulf %121, %125 : vector<2x8x8xf32>
    %127 = arith.truncf %126 : vector<2x8x8xf32> to vector<2x8x8xbf16>
    "tpu.trace_start"() <{level = 10 : i32, message = "bqk,bkd->bqd"}> : () -> ()
    %cst_44 = arith.constant dense<0.000000e+00> : vector<2x8x8xf32>
    %128 = tpu.matmul %127, %113, %cst_44 {dimension_numbers = #tpu.dot_dimension_numbers<[2], [1], [1], [2], [0, 0, 0, 1, 1, 2], [0], [0]>} : vector<2x8x8xbf16>, vector<2x8x8xbf16>, vector<2x8x8xf32> -> vector<2x8x8xf32>
    "tpu.trace_stop"() : () -> ()
    %129 = vector.shape_cast %128 : vector<2x8x8xf32> to vector<16x8xf32>
    %130 = arith.truncf %129 : vector<16x8xf32> to vector<16x8xbf16>
    %c0_45 = arith.constant 0 : index
    %c3 = arith.constant 3 : index
    %c0_46 = arith.constant 0 : index
    %c0_47 = arith.constant 0 : index
    %131 = vector.load %arg10[%c0_45, %c3, %c0_46, %c0_47] : memref<1x4x8x32xbf16, #tpu.memory_space<vmem>>, vector<1x1x8x32xbf16>
    %132 = vector.shape_cast %131 : vector<1x1x8x32xbf16> to vector<8x32xbf16>
    %cst_48 = arith.constant dense<0.000000e+00> : vector<16x32xf32>
    %133 = tpu.matmul %130, %132, %cst_48 {dimension_numbers = #tpu.dot_dimension_numbers<[1], [0], [0], [1], [0, 0, 1, 1], [], []>} : vector<16x8xbf16>, vector<8x32xbf16>, vector<16x32xf32> -> vector<16x32xf32>
    %134 = arith.addf %104, %133 : vector<16x32xf32>
    %135 = vector.extract_strided_slice %13 {offsets = [0, 0], sizes = [1, 32], strides = [1, 1]} : vector<6x32xf32> to vector<1x32xf32>
    %136 = vector.broadcast %135 : vector<1x32xf32> to vector<16x32xf32>
    %137 = arith.addf %134, %136 : vector<16x32xf32>
    %138 = arith.addf %3, %137 : vector<16x32xf32>
    %139 = vector.extract_strided_slice %13 {offsets = [1, 0], sizes = [1, 32], strides = [1, 1]} : vector<6x32xf32> to vector<1x32xf32>
    %140 = vector.extract_strided_slice %13 {offsets = [2, 0], sizes = [1, 32], strides = [1, 1]} : vector<6x32xf32> to vector<1x32xf32>
    %cst_49 = arith.constant dense<0.000000e+00> : vector<16xf32>
    %141 = vector.multi_reduction <add>, %138, %cst_49 [1] : vector<16x32xf32> to vector<16xf32>
    %142 = vector.shape_cast %141 : vector<16xf32> to vector<16x1xf32>
    %cst_50 = arith.constant 3.200000e+01 : f32
    %143 = vector.broadcast %cst_50 : f32 to vector<16x1xf32>
    %144 = arith.divf %142, %143 : vector<16x1xf32>
    %145 = vector.broadcast %144 : vector<16x1xf32> to vector<16x32xf32>
    %146 = arith.subf %138, %145 : vector<16x32xf32>
    %147 = arith.mulf %146, %146 : vector<16x32xf32>
    %cst_51 = arith.constant dense<0.000000e+00> : vector<16xf32>
    %148 = vector.multi_reduction <add>, %147, %cst_51 [1] : vector<16x32xf32> to vector<16xf32>
    %149 = vector.shape_cast %148 : vector<16xf32> to vector<16x1xf32>
    %cst_52 = arith.constant 3.200000e+01 : f32
    %150 = vector.broadcast %cst_52 : f32 to vector<16x1xf32>
    %151 = arith.divf %149, %150 : vector<16x1xf32>
    %cst_53 = arith.constant 9.99999974E-6 : f32
    %152 = vector.broadcast %cst_53 : f32 to vector<16x1xf32>
    %153 = arith.addf %151, %152 : vector<16x1xf32>
    %154 = math.rsqrt %153 : vector<16x1xf32>
    %155 = vector.broadcast %154 : vector<16x1xf32> to vector<16x32xf32>
    %156 = arith.mulf %146, %155 : vector<16x32xf32>
    %157 = vector.broadcast %139 : vector<1x32xf32> to vector<16x32xf32>
    %158 = arith.mulf %156, %157 : vector<16x32xf32>
    %159 = vector.broadcast %140 : vector<1x32xf32> to vector<16x32xf32>
    %160 = arith.addf %158, %159 : vector<16x32xf32>
    %161 = arith.truncf %160 : vector<16x32xf32> to vector<16x32xbf16>
    %c0_54 = arith.constant 0 : index
    %c0_55 = arith.constant 0 : index
    %c0_56 = arith.constant 0 : index
    %162 = vector.load %arg12[%c0_54, %c0_55, %c0_56] : memref<1x32x64xbf16, #tpu.memory_space<vmem>>, vector<1x32x64xbf16>
    %163 = vector.shape_cast %162 : vector<1x32x64xbf16> to vector<32x64xbf16>
    %cst_57 = arith.constant dense<0.000000e+00> : vector<16x64xf32>
    %164 = tpu.matmul %161, %163, %cst_57 {dimension_numbers = #tpu.dot_dimension_numbers<[1], [0], [0], [1], [0, 0, 1, 1], [], []>} : vector<16x32xbf16>, vector<32x64xbf16>, vector<16x64xf32> -> vector<16x64xf32>
    %c0_58 = arith.constant 0 : index
    %c0_59 = arith.constant 0 : index
    %c0_60 = arith.constant 0 : index
    %165 = vector.load %arg13[%c0_58, %c0_59, %c0_60] : memref<1x1x64xf32, #tpu.memory_space<vmem>>, vector<1x1x64xf32>
    %166 = vector.shape_cast %165 : vector<1x1x64xf32> to vector<1x64xf32>
    %167 = vector.broadcast %166 : vector<1x64xf32> to vector<16x64xf32>
    %168 = arith.addf %164, %167 : vector<16x64xf32>
    %cst_61 = arith.constant 0.000000e+00 : f32
    %169 = vector.broadcast %cst_61 : f32 to vector<16x64xf32>
    %170 = arith.maximumf %168, %169 : vector<16x64xf32>
    %171 = arith.truncf %170 : vector<16x64xf32> to vector<16x64xbf16>
    %c0_62 = arith.constant 0 : index
    %c0_63 = arith.constant 0 : index
    %c0_64 = arith.constant 0 : index
    %172 = vector.load %arg14[%c0_62, %c0_63, %c0_64] : memref<1x64x32xbf16, #tpu.memory_space<vmem>>, vector<1x64x32xbf16>
    %173 = vector.shape_cast %172 : vector<1x64x32xbf16> to vector<64x32xbf16>
    %cst_65 = arith.constant dense<0.000000e+00> : vector<16x32xf32>
    %174 = tpu.matmul %171, %173, %cst_65 {dimension_numbers = #tpu.dot_dimension_numbers<[1], [0], [0], [1], [0, 0, 1, 1], [], []>} : vector<16x64xbf16>, vector<64x32xbf16>, vector<16x32xf32> -> vector<16x32xf32>
    %175 = vector.extract_strided_slice %13 {offsets = [3, 0], sizes = [1, 32], strides = [1, 1]} : vector<6x32xf32> to vector<1x32xf32>
    %176 = vector.broadcast %175 : vector<1x32xf32> to vector<16x32xf32>
    %177 = arith.addf %174, %176 : vector<16x32xf32>
    %178 = arith.addf %160, %177 : vector<16x32xf32>
    %179 = vector.extract_strided_slice %13 {offsets = [4, 0], sizes = [1, 32], strides = [1, 1]} : vector<6x32xf32> to vector<1x32xf32>
    %180 = vector.extract_strided_slice %13 {offsets = [5, 0], sizes = [1, 32], strides = [1, 1]} : vector<6x32xf32> to vector<1x32xf32>
    %cst_66 = arith.constant dense<0.000000e+00> : vector<16xf32>
    %181 = vector.multi_reduction <add>, %178, %cst_66 [1] : vector<16x32xf32> to vector<16xf32>
    %182 = vector.shape_cast %181 : vector<16xf32> to vector<16x1xf32>
    %cst_67 = arith.constant 3.200000e+01 : f32
    %183 = vector.broadcast %cst_67 : f32 to vector<16x1xf32>
    %184 = arith.divf %182, %183 : vector<16x1xf32>
    %185 = vector.broadcast %184 : vector<16x1xf32> to vector<16x32xf32>
    %186 = arith.subf %178, %185 : vector<16x32xf32>
    %187 = arith.mulf %186, %186 : vector<16x32xf32>
    %cst_68 = arith.constant dense<0.000000e+00> : vector<16xf32>
    %188 = vector.multi_reduction <add>, %187, %cst_68 [1] : vector<16x32xf32> to vector<16xf32>
    %189 = vector.shape_cast %188 : vector<16xf32> to vector<16x1xf32>
    %cst_69 = arith.constant 3.200000e+01 : f32
    %190 = vector.broadcast %cst_69 : f32 to vector<16x1xf32>
    %191 = arith.divf %189, %190 : vector<16x1xf32>
    %cst_70 = arith.constant 9.99999974E-6 : f32
    %192 = vector.broadcast %cst_70 : f32 to vector<16x1xf32>
    %193 = arith.addf %191, %192 : vector<16x1xf32>
    %194 = math.rsqrt %193 : vector<16x1xf32>
    %195 = vector.broadcast %194 : vector<16x1xf32> to vector<16x32xf32>
    %196 = arith.mulf %186, %195 : vector<16x32xf32>
    %197 = vector.broadcast %179 : vector<1x32xf32> to vector<16x32xf32>
    %198 = arith.mulf %196, %197 : vector<16x32xf32>
    %199 = vector.broadcast %180 : vector<1x32xf32> to vector<16x32xf32>
    %200 = arith.addf %198, %199 : vector<16x32xf32>
    %c0_71 = arith.constant 0 : index
    %c0_72 = arith.constant 0 : index
    %201 = vector.load %arg16[%c0_71, %c0_72] : memref<16x32xf32, #tpu.memory_space<vmem>>, vector<16x32xf32>
    tpu.vector_store %arg16[%c0_71, %c0_72], %200 {strides = array<i32>} : memref<16x32xf32, #tpu.memory_space<vmem>>, vector<16x32xf32>,
    %c1_i32 = arith.constant 1 : i32
    %202 = arith.cmpi eq, %arg1, %c1_i32 : i32
    %203 = arith.extui %202 : i1 to i32
    %c0_i32_73 = arith.constant 0 : i32
    %204 = arith.cmpi ne, %203, %c0_i32_73 : i32
    scf.if %204 {
      %205 = vector.shape_cast %200 : vector<16x32xf32> to vector<2x8x32xf32>
      %cst_74 = arith.constant dense<0.000000e+00> : vector<2x32xf32>
      %206 = vector.multi_reduction <add>, %205, %cst_74 [1] : vector<2x8x32xf32> to vector<2x32xf32>
      %cst_75 = arith.constant 8.000000e+00 : f32
      %207 = vector.broadcast %cst_75 : f32 to vector<2x32xf32>
      %208 = arith.divf %206, %207 : vector<2x32xf32>
      %209 = arith.truncf %208 : vector<2x32xf32> to vector<2x32xbf16>
      %c0_76 = arith.constant 0 : index
      %c0_77 = arith.constant 0 : index
      %210 = vector.load %arg6[%c0_76, %c0_77] : memref<32x8xbf16, #tpu.memory_space<vmem>>, vector<32x8xbf16>
      %cst_78 = arith.constant dense<0.000000e+00> : vector<2x8xf32>
      %211 = tpu.matmul %209, %210, %cst_78 {dimension_numbers = #tpu.dot_dimension_numbers<[1], [0], [0], [1], [0, 0, 1, 1], [], []>} : vector<2x32xbf16>, vector<32x8xbf16>, vector<2x8xf32> -> vector<2x8xf32>
      %c0_79 = arith.constant 0 : index
      %c0_80 = arith.constant 0 : index
      %212 = vector.load %arg7[%c0_79, %c0_80] : memref<1x8xf32, #tpu.memory_space<vmem>>, vector<1x8xf32>
      %213 = vector.broadcast %212 : vector<1x8xf32> to vector<2x8xf32>
      %214 = arith.addf %211, %213 : vector<2x8xf32>
      %c0_81 = arith.constant 0 : index
      %c0_82 = arith.constant 0 : index
      %215 = vector.load %arg15[%c0_81, %c0_82] : memref<2x8xf32, #tpu.memory_space<vmem>>, vector<2x8xf32>
      tpu.vector_store %arg15[%c0_81, %c0_82], %214 {strides = array<i32>} : memref<2x8xf32, #tpu.memory_space<vmem>>, vector<2x8xf32>,
    } else {
    }
    return
  }
  func.func @transform_0(%arg0: i32, %arg1: i32) -> (i32, i32) {
    %c0_i32 = arith.constant 0 : i32
    %c0_i32_0 = arith.constant 0 : i32
    return %arg0, %c0_i32 : i32, i32
  }
  func.func @transform_1(%arg0: i32, %arg1: i32) -> (i32, i32) {
    %c0_i32 = arith.constant 0 : i32
    %c0_i32_0 = arith.constant 0 : i32
    %c0_i32_1 = arith.constant 0 : i32
    return %c0_i32, %c0_i32_0 : i32, i32
  }
  func.func @transform_2(%arg0: i32, %arg1: i32) -> (i32, i32) {
    %c0_i32 = arith.constant 0 : i32
    %c0_i32_0 = arith.constant 0 : i32
    %c0_i32_1 = arith.constant 0 : i32
    return %c0_i32, %c0_i32_0 : i32, i32
  }
  func.func @transform_3(%arg0: i32, %arg1: i32) -> (i32, i32) {
    %c0_i32 = arith.constant 0 : i32
    %c0_i32_0 = arith.constant 0 : i32
    %c0_i32_1 = arith.constant 0 : i32
    return %c0_i32, %c0_i32_0 : i32, i32
  }
  func.func @transform_4(%arg0: i32, %arg1: i32) -> (i32, i32) {
    %c0_i32 = arith.constant 0 : i32
    %c0_i32_0 = arith.constant 0 : i32
    %c0_i32_1 = arith.constant 0 : i32
    return %c0_i32, %c0_i32_0 : i32, i32
  }
  func.func @transform_5(%arg0: i32, %arg1: i32) -> (i32, i32) {
    %c0_i32 = arith.constant 0 : i32
    %c0_i32_0 = arith.constant 0 : i32
    %c0_i32_1 = arith.constant 0 : i32
    return %c0_i32, %c0_i32_0 : i32, i32
  }
  func.func @transform_6(%arg0: i32, %arg1: i32) -> (i32, i32, i32) {
    %c0_i32 = arith.constant 0 : i32
    %c0_i32_0 = arith.constant 0 : i32
    %c0_i32_1 = arith.constant 0 : i32
    return %arg1, %c0_i32, %c0_i32_0 : i32, i32, i32
  }
  func.func @transform_7(%arg0: i32, %arg1: i32) -> (i32, i32, i32) {
    %c0_i32 = arith.constant 0 : i32
    %c0_i32_0 = arith.constant 0 : i32
    %c0_i32_1 = arith.constant 0 : i32
    return %arg1, %c0_i32, %c0_i32_0 : i32, i32, i32
  }
  func.func @transform_8(%arg0: i32, %arg1: i32) -> (i32, i32, i32, i32) {
    %c0_i32 = arith.constant 0 : i32
    %c0_i32_0 = arith.constant 0 : i32
    %c0_i32_1 = arith.constant 0 : i32
    %c0_i32_2 = arith.constant 0 : i32
    return %arg1, %c0_i32, %c0_i32_0, %c0_i32_1 : i32, i32, i32, i32
  }
  func.func @transform_9(%arg0: i32, %arg1: i32) -> (i32, i32, i32) {
    %c0_i32 = arith.constant 0 : i32
    %c0_i32_0 = arith.constant 0 : i32
    %c0_i32_1 = arith.constant 0 : i32
    return %arg1, %c0_i32, %c0_i32_0 : i32, i32, i32
  }
  func.func @transform_10(%arg0: i32, %arg1: i32) -> (i32, i32, i32) {
    %c0_i32 = arith.constant 0 : i32
    %c0_i32_0 = arith.constant 0 : i32
    %c0_i32_1 = arith.constant 0 : i32
    return %arg1, %c0_i32, %c0_i32_0 : i32, i32, i32
  }
  func.func @transform_11(%arg0: i32, %arg1: i32) -> (i32, i32, i32) {
    %c0_i32 = arith.constant 0 : i32
    %c0_i32_0 = arith.constant 0 : i32
    %c0_i32_1 = arith.constant 0 : i32
    return %arg1, %c0_i32, %c0_i32_0 : i32, i32, i32
  }
  func.func @transform_12(%arg0: i32, %arg1: i32) -> (i32, i32, i32) {
    %c0_i32 = arith.constant 0 : i32
    %c0_i32_0 = arith.constant 0 : i32
    %c0_i32_1 = arith.constant 0 : i32
    return %arg1, %c0_i32, %c0_i32_0 : i32, i32, i32
  }
  func.func @transform_13(%arg0: i32, %arg1: i32) -> (i32, i32) {
    %c0_i32 = arith.constant 0 : i32
    %c0_i32_0 = arith.constant 0 : i32
    return %arg0, %c0_i32 : i32, i32
  }
}

</mosaic_0001>

<llo_original>
// kernel: transformer_model_forward.1
$region0: #{transformer_model_forward.1}
  #allocation0 [shape = 'u32[]', space=smem, size = 0x4, offset = 0x4, fixed_abs, tag = 'smem constant byte address 0x4 - core index']
  #allocation1 [shape = 'u32[144,128]{1,0:T(1,128)}', space=vmem, size = 0x12000, scoped, tag = 'internal scratch']
  #allocation2 [shape = 'f32[16,32]{1,0:T(8,128)}', space=vmem, size = 0x2000, scoped, tag = 'scratch operand']
  %s0 = inlined_call_operand.vmem [shape: f32[16,16], index: 0, kind: input, shape index: {}]
  %s1 = inlined_call_operand.vmem [shape: f32[16,32], index: 1, kind: input, shape index: {}]
  %s2 = inlined_call_operand.vmem [shape: bf16[16,32], index: 2, kind: input, shape index: {}]
  %s3 = inlined_call_operand.vmem [shape: f32[1,32], index: 3, kind: input, shape index: {}]
  %s4 = inlined_call_operand.vmem [shape: bf16[32,8], index: 4, kind: input, shape index: {}]
  %s5 = inlined_call_operand.vmem [shape: f32[1,8], index: 5, kind: input, shape index: {}]
  %s6 = inlined_call_operand.vmem [shape: bf16[2,32,96], index: 6, kind: input, shape index: {}]
  %s7 = inlined_call_operand.vmem [shape: f32[2,1,96], index: 7, kind: input, shape index: {}]
  %s8 = inlined_call_operand.vmem [shape: bf16[2,4,8,32], index: 8, kind: input, shape index: {}]
  %s9 = inlined_call_operand.vmem [shape: f32[2,6,32], index: 9, kind: input, shape index: {}]
  %s10 = inlined_call_operand.vmem [shape: bf16[2,32,64], index: 10, kind: input, shape index: {}]
  %s11 = inlined_call_operand.vmem [shape: f32[2,1,64], index: 11, kind: input, shape index: {}]
  %s12 = inlined_call_operand.vmem [shape: bf16[2,64,32], index: 12, kind: input, shape index: {}]
  %s13 = inlined_call_operand.hbm [shape: f32[2,8], index: 13, kind: output, shape index: {}]
  %s14 = sld [smem:[#allocation0]]
  $region93: #{transformer_model_forward.1} parent=0
    _
  %s16 = ssub.s32 1, %s14
  %s17 = scalar_select 0, %s16, %s14
  $region1: #{transformer_model_forward.1} parent=0
    #allocation3 [shape = 'u8[1024]{0}', space=vmem, size = 0x400, scoped, tag = 'output window, operand 0, single buffered']
    #allocation4 [shape = 's32[2]{0}', space=sflag, size = 0x8, scoped, tag = 'scoped memory for transformer_model_forward.1']
    %18 = vsyncpa [#allocation4], 0
    loop: start=0, step=1, limit=4
    $region2: #{transformer_model_forward.1} parent=1 // loop_pre_header
      _
    $region3: #{transformer_model_forward.1} parent=1 // loop_header
      %s20 = sphi 0, %s24
      %p21 = scmp.ge.s32.totalorder %s20, 4
      %s27 = sphi 0, %s39
      %s28 = sphi 0, %s35
      %s29 = sphi 0, %s27
      %s30 = sphi 0, %s28
      %s31 = sphi 0, %s29
      %s32 = sphi 0, %s30
      %s42 = sphi 0, %s44
      %s45 = sphi 0, %s42
      %s46 = sphi 0, %s45
      %s62 = sphi 0, %s46
      %s66 = sphi 0, %s66
      %s68 = sphi 0, %s66
      %s69 = sphi 0, %s68
      %s83 = sphi 0, %s69
      %s87 = sphi 0, %s87
      %s89 = sphi 0, %s87
      %s90 = sphi 0, %s89
      %s104 = sphi 0, %s90
      %s108 = sphi 0, %s108
      %s110 = sphi 0, %s108
      %s111 = sphi 0, %s110
      %s125 = sphi 0, %s111
      %s129 = sphi 0, %s129
      %s131 = sphi 0, %s129
      %s132 = sphi 0, %s131
      %s146 = sphi 0, %s132
      %s150 = sphi 0, %s150
      %s152 = sphi 0, %s150
      %s153 = sphi 0, %s152
      %s167 = sphi 0, %s153
      %s173 = sphi 0, %s175
      %s176 = sphi 0, %s173
      %s177 = sphi 0, %s176
      %s193 = sphi 0, %s177
      %s199 = sphi 0, %s201
      %s202 = sphi 0, %s199
      %s203 = sphi 0, %s202
      %s219 = sphi 0, %s203
      %s225 = sphi 0, %s227
      %s228 = sphi 0, %s225
      %s229 = sphi 0, %s228
      %s245 = sphi 0, %s229
      %s251 = sphi 0, %s253
      %s254 = sphi 0, %s251
      %s255 = sphi 0, %s254
      %s271 = sphi 0, %s255
      %s277 = sphi 0, %s279
      %s280 = sphi 0, %s277
      %s281 = sphi 0, %s280
      %s297 = sphi 0, %s281
      %s303 = sphi 0, %s305
      %s306 = sphi 0, %s303
      %s307 = sphi 0, %s306
      %s323 = sphi 0, %s307
      %s329 = sphi 0, %s331
      %s332 = sphi 0, %s329
      %s333 = sphi 0, %s332
      %s349 = sphi 0, %s333
      %s355 = sphi 0, %s357
      %s358 = sphi 0, %s355
      %s359 = sphi 0, %s358
      %s375 = sphi 0, %s359
    $region4: #{transformer_model_forward.1} parent=1 // loop_header_branch
      %23 = sbr.rel (%p21) target = $region8
    $region5: #{transformer_model_forward.1} parent=1 // loop_body
      %s25 = ssub.s32 %s20, 1
      %s26 = ssub.s32 %s20, 2
      %s33 = sadd.s32 1, %s28
      %p34 = scmp.ge.s32.totalorder %s33, 2
      %s35 = scalar_select %p34, 0, %s33
      %s36 = sadd.s32 1, %s27
      %s37 = scalar_select %p34, %s36, %s27
      %p38 = scmp.ge.s32.totalorder %s37, 1
      %s39 = scalar_select %p38, 0, %s37
      %s40 = ssub.s32 %s27, %s39
      %p41 = scmp.eq.s32.totalorder %s40, 0
      %s43 = sadd.s32 %s42, 1
      %s44 = scalar_select %p41, %s42, %s43
      %p47 = pneg %p41
      %p48 = scmp.eq.s32.totalorder %s20, 1
      %p49 = por %p47, %p48
      %p50 = scmp.ne.s32.totalorder %s42, %s45
      %p51 = scmp.eq.s32.totalorder %s20, 0
      %p52 = por %p50, %p51
      %p53 = scmp.ne.s32.totalorder %s42, %s45
      %p54 = scmp.eq.s32.totalorder %s25, 1
      %p55 = por %p53, %p54
      %p56 = scmp.ne.s32.totalorder %s45, %s46
      %p57 = scmp.eq.s32.totalorder %s25, 0
      %p58 = por %p56, %p57
      %p59 = scmp.ne.s32.totalorder %s45, %s46
      %p60 = scmp.eq.s32.totalorder %s26, 1
      %p61 = por %p59, %p60
      %p63 = scmp.ne.s32.totalorder %s46, %s62
      %p64 = scmp.eq.s32.totalorder %s26, 0
      %p65 = por %p63, %p64
      %s67 = sadd.s32 %s66, 1
      %p70 = scmp.eq.s32.totalorder %s20, 1
      %p71 = scmp.ne.s32.totalorder %s66, %s68
      %p72 = scmp.eq.s32.totalorder %s20, 0
      %p73 = por %p71, %p72
      %p74 = scmp.ne.s32.totalorder %s66, %s68
      %p75 = scmp.eq.s32.totalorder %s25, 1
      %p76 = por %p74, %p75
      %p77 = scmp.ne.s32.totalorder %s68, %s69
      %p78 = scmp.eq.s32.totalorder %s25, 0
      %p79 = por %p77, %p78
      %p80 = scmp.ne.s32.totalorder %s68, %s69
      %p81 = scmp.eq.s32.totalorder %s26, 1
      %p82 = por %p80, %p81
      %p84 = scmp.ne.s32.totalorder %s69, %s83
      %p85 = scmp.eq.s32.totalorder %s26, 0
      %p86 = por %p84, %p85
      %s88 = sadd.s32 %s87, 1
      %p91 = scmp.eq.s32.totalorder %s20, 1
      %p92 = scmp.ne.s32.totalorder %s87, %s89
      %p93 = scmp.eq.s32.totalorder %s20, 0
      %p94 = por %p92, %p93
      %p95 = scmp.ne.s32.totalorder %s87, %s89
      %p96 = scmp.eq.s32.totalorder %s25, 1
      %p97 = por %p95, %p96
      %p98 = scmp.ne.s32.totalorder %s89, %s90
      %p99 = scmp.eq.s32.totalorder %s25, 0
      %p100 = por %p98, %p99
      %p101 = scmp.ne.s32.totalorder %s89, %s90
      %p102 = scmp.eq.s32.totalorder %s26, 1
      %p103 = por %p101, %p102
      %p105 = scmp.ne.s32.totalorder %s90, %s104
      %p106 = scmp.eq.s32.totalorder %s26, 0
      %p107 = por %p105, %p106
      %s109 = sadd.s32 %s108, 1
      %p112 = scmp.eq.s32.totalorder %s20, 1
      %p113 = scmp.ne.s32.totalorder %s108, %s110
      %p114 = scmp.eq.s32.totalorder %s20, 0
      %p115 = por %p113, %p114
      %p116 = scmp.ne.s32.totalorder %s108, %s110
      %p117 = scmp.eq.s32.totalorder %s25, 1
      %p118 = por %p116, %p117
      %p119 = scmp.ne.s32.totalorder %s110, %s111
      %p120 = scmp.eq.s32.totalorder %s25, 0
      %p121 = por %p119, %p120
      %p122 = scmp.ne.s32.totalorder %s110, %s111
      %p123 = scmp.eq.s32.totalorder %s26, 1
      %p124 = por %p122, %p123
      %p126 = scmp.ne.s32.totalorder %s111, %s125
      %p127 = scmp.eq.s32.totalorder %s26, 0
      %p128 = por %p126, %p127
      %s130 = sadd.s32 %s129, 1
      %p133 = scmp.eq.s32.totalorder %s20, 1
      %p134 = scmp.ne.s32.totalorder %s129, %s131
      %p135 = scmp.eq.s32.totalorder %s20, 0
      %p136 = por %p134, %p135
      %p137 = scmp.ne.s32.totalorder %s129, %s131
      %p138 = scmp.eq.s32.totalorder %s25, 1
      %p139 = por %p137, %p138
      %p140 = scmp.ne.s32.totalorder %s131, %s132
      %p141 = scmp.eq.s32.totalorder %s25, 0
      %p142 = por %p140, %p141
      %p143 = scmp.ne.s32.totalorder %s131, %s132
      %p144 = scmp.eq.s32.totalorder %s26, 1
      %p145 = por %p143, %p144
      %p147 = scmp.ne.s32.totalorder %s132, %s146
      %p148 = scmp.eq.s32.totalorder %s26, 0
      %p149 = por %p147, %p148
      %s151 = sadd.s32 %s150, 1
      %p154 = scmp.eq.s32.totalorder %s20, 1
      %p155 = scmp.ne.s32.totalorder %s150, %s152
      %p156 = scmp.eq.s32.totalorder %s20, 0
      %p157 = por %p155, %p156
      %p158 = scmp.ne.s32.totalorder %s150, %s152
      %p159 = scmp.eq.s32.totalorder %s25, 1
      %p160 = por %p158, %p159
      %p161 = scmp.ne.s32.totalorder %s152, %s153
      %p162 = scmp.eq.s32.totalorder %s25, 0
      %p163 = por %p161, %p162
      %p164 = scmp.ne.s32.totalorder %s152, %s153
      %p165 = scmp.eq.s32.totalorder %s26, 1
      %p166 = por %p164, %p165
      %p168 = scmp.ne.s32.totalorder %s153, %s167
      %p169 = scmp.eq.s32.totalorder %s26, 0
      %p170 = por %p168, %p169
      %s171 = ssub.s32 %s28, %s35
      %p172 = scmp.eq.s32.totalorder %s171, 0
      %s174 = sadd.s32 %s173, 1
      %s175 = scalar_select %p172, %s173, %s174
      %p178 = pneg %p172
      %p179 = scmp.eq.s32.totalorder %s20, 1
      %p180 = por %p178, %p179
      %p181 = scmp.ne.s32.totalorder %s173, %s176
      %p182 = scmp.eq.s32.totalorder %s20, 0
      %p183 = por %p181, %p182
      %p184 = scmp.ne.s32.totalorder %s173, %s176
      %p185 = scmp.eq.s32.totalorder %s25, 1
      %p186 = por %p184, %p185
      %p187 = scmp.ne.s32.totalorder %s176, %s177
      %p188 = scmp.eq.s32.totalorder %s25, 0
      %p189 = por %p187, %p188
      %p190 = scmp.ne.s32.totalorder %s176, %s177
      %p191 = scmp.eq.s32.totalorder %s26, 1
      %p192 = por %p190, %p191
      %p194 = scmp.ne.s32.totalorder %s177, %s193
      %p195 = scmp.eq.s32.totalorder %s26, 0
      %p196 = por %p194, %p195
      %s197 = ssub.s32 %s28, %s35
      %p198 = scmp.eq.s32.totalorder %s197, 0
      %s200 = sadd.s32 %s199, 1
      %s201 = scalar_select %p198, %s199, %s200
      %p204 = pneg %p198
      %p205 = scmp.eq.s32.totalorder %s20, 1
      %p206 = por %p204, %p205
      %p207 = scmp.ne.s32.totalorder %s199, %s202
      %p208 = scmp.eq.s32.totalorder %s20, 0
      %p209 = por %p207, %p208
      %p210 = scmp.ne.s32.totalorder %s199, %s202
      %p211 = scmp.eq.s32.totalorder %s25, 1
      %p212 = por %p210, %p211
      %p213 = scmp.ne.s32.totalorder %s202, %s203
      %p214 = scmp.eq.s32.totalorder %s25, 0
      %p215 = por %p213, %p214
      %p216 = scmp.ne.s32.totalorder %s202, %s203
      %p217 = scmp.eq.s32.totalorder %s26, 1
      %p218 = por %p216, %p217
      %p220 = scmp.ne.s32.totalorder %s203, %s219
      %p221 = scmp.eq.s32.totalorder %s26, 0
      %p222 = por %p220, %p221
      %s223 = ssub.s32 %s28, %s35
      %p224 = scmp.eq.s32.totalorder %s223, 0
      %s226 = sadd.s32 %s225, 1
      %s227 = scalar_select %p224, %s225, %s226
      %p230 = pneg %p224
      %p231 = scmp.eq.s32.totalorder %s20, 1
      %p232 = por %p230, %p231
      %p233 = scmp.ne.s32.totalorder %s225, %s228
      %p234 = scmp.eq.s32.totalorder %s20, 0
      %p235 = por %p233, %p234
      %p236 = scmp.ne.s32.totalorder %s225, %s228
      %p237 = scmp.eq.s32.totalorder %s25, 1
      %p238 = por %p236, %p237
      %p239 = scmp.ne.s32.totalorder %s228, %s229
      %p240 = scmp.eq.s32.totalorder %s25, 0
      %p241 = por %p239, %p240
      %p242 = scmp.ne.s32.totalorder %s228, %s229
      %p243 = scmp.eq.s32.totalorder %s26, 1
      %p244 = por %p242, %p243
      %p246 = scmp.ne.s32.totalorder %s229, %s245
      %p247 = scmp.eq.s32.totalorder %s26, 0
      %p248 = por %p246, %p247
      %s249 = ssub.s32 %s28, %s35
      %p250 = scmp.eq.s32.totalorder %s249, 0
      %s252 = sadd.s32 %s251, 1
      %s253 = scalar_select %p250, %s251, %s252
      %p256 = pneg %p250
      %p257 = scmp.eq.s32.totalorder %s20, 1
      %p258 = por %p256, %p257
      %p259 = scmp.ne.s32.totalorder %s251, %s254
      %p260 = scmp.eq.s32.totalorder %s20, 0
      %p261 = por %p259, %p260
      %p262 = scmp.ne.s32.totalorder %s251, %s254
      %p263 = scmp.eq.s32.totalorder %s25, 1
      %p264 = por %p262, %p263
      %p265 = scmp.ne.s32.totalorder %s254, %s255
      %p266 = scmp.eq.s32.totalorder %s25, 0
      %p267 = por %p265, %p266
      %p268 = scmp.ne.s32.totalorder %s254, %s255
      %p269 = scmp.eq.s32.totalorder %s26, 1
      %p270 = por %p268, %p269
      %p272 = scmp.ne.s32.totalorder %s255, %s271
      %p273 = scmp.eq.s32.totalorder %s26, 0
      %p274 = por %p272, %p273
      %s275 = ssub.s32 %s28, %s35
      %p276 = scmp.eq.s32.totalorder %s275, 0
      %s278 = sadd.s32 %s277, 1
      %s279 = scalar_select %p276, %s277, %s278
      %p282 = pneg %p276
      %p283 = scmp.eq.s32.totalorder %s20, 1
      %p284 = por %p282, %p283
      %p285 = scmp.ne.s32.totalorder %s277, %s280
      %p286 = scmp.eq.s32.totalorder %s20, 0
      %p287 = por %p285, %p286
      %p288 = scmp.ne.s32.totalorder %s277, %s280
      %p289 = scmp.eq.s32.totalorder %s25, 1
      %p290 = por %p288, %p289
      %p291 = scmp.ne.s32.totalorder %s280, %s281
      %p292 = scmp.eq.s32.totalorder %s25, 0
      %p293 = por %p291, %p292
      %p294 = scmp.ne.s32.totalorder %s280, %s281
      %p295 = scmp.eq.s32.totalorder %s26, 1
      %p296 = por %p294, %p295
      %p298 = scmp.ne.s32.totalorder %s281, %s297
      %p299 = scmp.eq.s32.totalorder %s26, 0
      %p300 = por %p298, %p299
      %s301 = ssub.s32 %s28, %s35
      %p302 = scmp.eq.s32.totalorder %s301, 0
      %s304 = sadd.s32 %s303, 1
      %s305 = scalar_select %p302, %s303, %s304
      %p308 = pneg %p302
      %p309 = scmp.eq.s32.totalorder %s20, 1
      %p310 = por %p308, %p309
      %p311 = scmp.ne.s32.totalorder %s303, %s306
      %p312 = scmp.eq.s32.totalorder %s20, 0
      %p313 = por %p311, %p312
      %p314 = scmp.ne.s32.totalorder %s303, %s306
      %p315 = scmp.eq.s32.totalorder %s25, 1
      %p316 = por %p314, %p315
      %p317 = scmp.ne.s32.totalorder %s306, %s307
      %p318 = scmp.eq.s32.totalorder %s25, 0
      %p319 = por %p317, %p318
      %p320 = scmp.ne.s32.totalorder %s306, %s307
      %p321 = scmp.eq.s32.totalorder %s26, 1
      %p322 = por %p320, %p321
      %p324 = scmp.ne.s32.totalorder %s307, %s323
      %p325 = scmp.eq.s32.totalorder %s26, 0
      %p326 = por %p324, %p325
      %s327 = ssub.s32 %s28, %s35
      %p328 = scmp.eq.s32.totalorder %s327, 0
      %s330 = sadd.s32 %s329, 1
      %s331 = scalar_select %p328, %s329, %s330
      %p334 = pneg %p328
      %p335 = scmp.eq.s32.totalorder %s20, 1
      %p336 = por %p334, %p335
      %p337 = scmp.ne.s32.totalorder %s329, %s332
      %p338 = scmp.eq.s32.totalorder %s20, 0
      %p339 = por %p337, %p338
      %p340 = scmp.ne.s32.totalorder %s329, %s332
      %p341 = scmp.eq.s32.totalorder %s25, 1
      %p342 = por %p340, %p341
      %p343 = scmp.ne.s32.totalorder %s332, %s333
      %p344 = scmp.eq.s32.totalorder %s25, 0
      %p345 = por %p343, %p344
      %p346 = scmp.ne.s32.totalorder %s332, %s333
      %p347 = scmp.eq.s32.totalorder %s26, 1
      %p348 = por %p346, %p347
      %p350 = scmp.ne.s32.totalorder %s333, %s349
      %p351 = scmp.eq.s32.totalorder %s26, 0
      %p352 = por %p350, %p351
      %s353 = ssub.s32 %s27, %s39
      %p354 = scmp.eq.s32.totalorder %s353, 0
      %s356 = sadd.s32 %s355, 1
      %s357 = scalar_select %p354, %s355, %s356
      %p360 = pneg %p354
      %p361 = scmp.eq.s32.totalorder %s20, 1
      %p362 = por %p360, %p361
      %p363 = scmp.ne.s32.totalorder %s355, %s358
      %p364 = scmp.eq.s32.totalorder %s20, 0
      %p365 = por %p363, %p364
      %p366 = scmp.ne.s32.totalorder %s355, %s358
      %p367 = scmp.eq.s32.totalorder %s25, 1
      %p368 = por %p366, %p367
      %p369 = scmp.ne.s32.totalorder %s358, %s359
      %p370 = scmp.eq.s32.totalorder %s25, 0
      %p371 = por %p369, %p370
      %p372 = scmp.ne.s32.totalorder %s358, %s359
      %p373 = scmp.eq.s32.totalorder %s26, 1
      %p374 = por %p372, %p373
      %p376 = scmp.ne.s32.totalorder %s359, %s375
      %p377 = scmp.eq.s32.totalorder %s26, 0
      %p378 = por %p376, %p377
      %p379 = scmp.le.s32.totalorder 1, %s20
      %p380 = scmp.lt.s32.totalorder %s20, 3
      %p381 = pnand %p379, %p380
      %p382 = pneg %p381
      // Predicated region
      $region9: #{transformer_model_forward.1} parent=5 // pred_check
        _
      $region10: #{transformer_model_forward.1} parent=5 // pred_check_branch
        %384 = sbr.rel (%p381) target = $region12
      $region11: #{transformer_model_forward.1} parent=5 // pred_region
        %s385 = ssub.s32 %s20, 1
        // Predicated region
        $region13: #{transformer_model_forward.1} parent=11 // pred_check
          %p386 = pneg %p58
        $region14: #{transformer_model_forward.1} parent=11 // pred_check_branch
          %388 = sbr.rel (%p386) target = $region16
        $region15: #{transformer_model_forward.1} parent=11 // pred_region
          %s389 = smul.u32 2, %s29
          %p390 = scmp.lt.s32.totalorder %s389, 1
          %s391 = scalar_select %p390, %s389, 1
          %s392 = smul.addr %s391, 8
          %s393 = scalar_lea.vmem %s0, %s392
          %s394 = smul.u32 2, %s29
        $region16: #{transformer_model_forward.1} parent=11 // pred_fallthru
          _
        // Predicated region
        $region17: #{transformer_model_forward.1} parent=11 // pred_check
          %p395 = pneg %p79
        $region18: #{transformer_model_forward.1} parent=11 // pred_check_branch
          %397 = sbr.rel (%p395) target = $region20
        $region19: #{transformer_model_forward.1} parent=11 // pred_region
          _
        $region20: #{transformer_model_forward.1} parent=11 // pred_fallthru
          _
        // Predicated region
        $region21: #{transformer_model_forward.1} parent=11 // pred_check
          %p398 = pneg %p100
        $region22: #{transformer_model_forward.1} parent=11 // pred_check_branch
          %400 = sbr.rel (%p398) target = $region24
        $region23: #{transformer_model_forward.1} parent=11 // pred_region
          _
        $region24: #{transformer_model_forward.1} parent=11 // pred_fallthru
          _
        // Predicated region
        $region25: #{transformer_model_forward.1} parent=11 // pred_check
          %p401 = pneg %p121
        $region26: #{transformer_model_forward.1} parent=11 // pred_check_branch
          %403 = sbr.rel (%p401) target = $region28
        $region27: #{transformer_model_forward.1} parent=11 // pred_region
          _
        $region28: #{transformer_model_forward.1} parent=11 // pred_fallthru
          _
        // Predicated region
        $region29: #{transformer_model_forward.1} parent=11 // pred_check
          %p404 = pneg %p142
        $region30: #{transformer_model_forward.1} parent=11 // pred_check_branch
          %406 = sbr.rel (%p404) target = $region32
        $region31: #{transformer_model_forward.1} parent=11 // pred_region
          _
        $region32: #{transformer_model_forward.1} parent=11 // pred_fallthru
          _
        // Predicated region
        $region33: #{transformer_model_forward.1} parent=11 // pred_check
          %p407 = pneg %p163
        $region34: #{transformer_model_forward.1} parent=11 // pred_check_branch
          %409 = sbr.rel (%p407) target = $region36
        $region35: #{transformer_model_forward.1} parent=11 // pred_region
          _
        $region36: #{transformer_model_forward.1} parent=11 // pred_fallthru
          _
      $region12: #{transformer_model_forward.1} parent=5 // pred_fallthru
        _
      %p410 = scmp.lt.s32.totalorder %s20, 2
      // Predicated region
      $region37: #{transformer_model_forward.1} parent=5 // pred_check
        %p411 = pneg %p410
      $region38: #{transformer_model_forward.1} parent=5 // pred_check_branch
        %413 = sbr.rel (%p411) target = $region40
      $region39: #{transformer_model_forward.1} parent=5 // pred_region
        // Predicated region
        $region41: #{transformer_model_forward.1} parent=39 // pred_check
          %p414 = pneg %p183
        $region42: #{transformer_model_forward.1} parent=39 // pred_check_branch
          %416 = sbr.rel (%p414) target = $region44
        $region43: #{transformer_model_forward.1} parent=39 // pred_region
          %p417 = scmp.lt.s32.totalorder %s28, 1
          %s418 = scalar_select %p417, %s28, 1
          %s419 = smul.addr %s418, 4
          %s420 = smul.addr %s419, 4
          %s421 = scalar_lea.vmem %s6, %s420
        $region44: #{transformer_model_forward.1} parent=39 // pred_fallthru
          _
        // Predicated region
        $region45: #{transformer_model_forward.1} parent=39 // pred_check
          %p422 = pneg %p209
        $region46: #{transformer_model_forward.1} parent=39 // pred_check_branch
          %424 = sbr.rel (%p422) target = $region48
        $region47: #{transformer_model_forward.1} parent=39 // pred_region
          %p425 = scmp.lt.s32.totalorder %s28, 1
          %s426 = scalar_select %p425, %s28, 1
          %s427 = scalar_lea.vmem %s7, %s426
        $region48: #{transformer_model_forward.1} parent=39 // pred_fallthru
          _
        // Predicated region
        $region49: #{transformer_model_forward.1} parent=39 // pred_check
          %p428 = pneg %p235
        $region50: #{transformer_model_forward.1} parent=39 // pred_check_branch
          %430 = sbr.rel (%p428) target = $region52
        $region51: #{transformer_model_forward.1} parent=39 // pred_region
          %p431 = scmp.lt.s32.totalorder %s28, 1
          %s432 = scalar_select %p431, %s28, 1
          %s433 = smul.addr %s432, 4
          %s434 = smul.addr %s433, 4
          %s435 = scalar_lea.vmem %s8, %s434
        $region52: #{transformer_model_forward.1} parent=39 // pred_fallthru
          _
        // Predicated region
        $region53: #{transformer_model_forward.1} parent=39 // pred_check
          %p436 = pneg %p261
        $region54: #{transformer_model_forward.1} parent=39 // pred_check_branch
          %438 = sbr.rel (%p436) target = $region56
        $region55: #{transformer_model_forward.1} parent=39 // pred_region
          %p439 = scmp.lt.s32.totalorder %s28, 1
          %s440 = scalar_select %p439, %s28, 1
          %s441 = smul.addr %s440, 8
          %s442 = scalar_lea.vmem %s9, %s441
        $region56: #{transformer_model_forward.1} parent=39 // pred_fallthru
          _
        // Predicated region
        $region57: #{transformer_model_forward.1} parent=39 // pred_check
          %p443 = pneg %p287
        $region58: #{transformer_model_forward.1} parent=39 // pred_check_branch
          %445 = sbr.rel (%p443) target = $region60
        $region59: #{transformer_model_forward.1} parent=39 // pred_region
          %p446 = scmp.lt.s32.totalorder %s28, 1
          %s447 = scalar_select %p446, %s28, 1
          %s448 = smul.addr %s447, 4
          %s449 = smul.addr %s448, 4
          %s450 = scalar_lea.vmem %s10, %s449
        $region60: #{transformer_model_forward.1} parent=39 // pred_fallthru
          _
        // Predicated region
        $region61: #{transformer_model_forward.1} parent=39 // pred_check
          %p451 = pneg %p313
        $region62: #{transformer_model_forward.1} parent=39 // pred_check_branch
          %453 = sbr.rel (%p451) target = $region64
        $region63: #{transformer_model_forward.1} parent=39 // pred_region
          %p454 = scmp.lt.s32.totalorder %s28, 1
          %s455 = scalar_select %p454, %s28, 1
          %s456 = scalar_lea.vmem %s11, %s455
        $region64: #{transformer_model_forward.1} parent=39 // pred_fallthru
          _
        // Predicated region
        $region65: #{transformer_model_forward.1} parent=39 // pred_check
          %p457 = pneg %p339
        $region66: #{transformer_model_forward.1} parent=39 // pred_check_branch
          %459 = sbr.rel (%p457) target = $region68
        $region67: #{transformer_model_forward.1} parent=39 // pred_region
          %p460 = scmp.lt.s32.totalorder %s28, 1
          %s461 = scalar_select %p460, %s28, 1
          %s462 = smul.addr %s461, 8
          %s463 = smul.addr %s462, 4
          %s464 = scalar_lea.vmem %s12, %s463
        $region68: #{transformer_model_forward.1} parent=39 // pred_fallthru
          _
      $region40: #{transformer_model_forward.1} parent=5 // pred_fallthru
        _
      %p465 = scmp.le.s32.totalorder 1, %s20
      %p466 = scmp.lt.s32.totalorder %s20, 3
      %p467 = pnand %p465, %p466
      %p468 = pneg %p467
      // Predicated region
      $region69: #{transformer_model_forward.1} parent=5 // pred_check
        _
      $region70: #{transformer_model_forward.1} parent=5 // pred_check_branch
        %470 = sbr.rel (%p467) target = $region72
      $region71: #{transformer_model_forward.1} parent=5 // pred_region
        %s471 = ssub.s32 %s20, 1
        %s472 = smul.u32 2, %s29
        %p473 = scmp.lt.s32.totalorder %s472, 1
        %s474 = scalar_select %p473, %s472, 1
        %s475 = smul.addr %s474, 8
        %s476 = scalar_lea.vmem %s0, %s475
        %p477 = pneg %p58
        %p478 = pneg %p55
        %p479 = pneg %p79
        %p480 = pneg %p76
        %p481 = pneg %p100
        %p482 = pneg %p97
        %p483 = pneg %p121
        %p484 = pneg %p118
        %p485 = pneg %p142
        %p486 = pneg %p139
        %p487 = pneg %p163
        %p488 = pneg %p160
        %p489 = scmp.lt.s32.totalorder %s30, 1
        %s490 = scalar_select %p489, %s30, 1
        %s491 = smul.addr %s490, 4
        %s492 = smul.addr %s491, 4
        %s493 = scalar_lea.vmem %s6, %s492
        %p494 = pneg %p189
        %p495 = pneg %p186
        %p496 = scmp.lt.s32.totalorder %s30, 1
        %s497 = scalar_select %p496, %s30, 1
        %s498 = scalar_lea.vmem %s7, %s497
        %p499 = pneg %p215
        %p500 = pneg %p212
        %p501 = scmp.lt.s32.totalorder %s30, 1
        %s502 = scalar_select %p501, %s30, 1
        %s503 = smul.addr %s502, 4
        %s504 = smul.addr %s503, 4
        %s505 = scalar_lea.vmem %s8, %s504
        %p506 = pneg %p241
        %p507 = pneg %p238
        %p508 = scmp.lt.s32.totalorder %s30, 1
        %s509 = scalar_select %p508, %s30, 1
        %s510 = smul.addr %s509, 8
        %s511 = scalar_lea.vmem %s9, %s510
        %p512 = pneg %p267
        %p513 = pneg %p264
        %p514 = scmp.lt.s32.totalorder %s30, 1
        %s515 = scalar_select %p514, %s30, 1
        %s516 = smul.addr %s515, 4
        %s517 = smul.addr %s516, 4
        %s518 = scalar_lea.vmem %s10, %s517
        %p519 = pneg %p293
        %p520 = pneg %p290
        %p521 = scmp.lt.s32.totalorder %s30, 1
        %s522 = scalar_select %p521, %s30, 1
        %s523 = scalar_lea.vmem %s11, %s522
        %p524 = pneg %p319
        %p525 = pneg %p316
        %p526 = scmp.lt.s32.totalorder %s30, 1
        %s527 = scalar_select %p526, %s30, 1
        %s528 = smul.addr %s527, 8
        %s529 = smul.addr %s528, 4
        %s530 = scalar_lea.vmem %s12, %s529
        %p531 = pneg %p345
        %p532 = pneg %p342
        %p533 = pneg %p371
        %p534 = pneg %p368
        %s535 = smul.u32 2, %s29
        %p536 = scmp.lt.s32.totalorder %s535, 1
        %s537 = scalar_select %p536, %s535, 1
        %s538 = smul.addr %s537, 8
        %s539 = scalar_lea.vmem %s0, %s538
        %s540 = smul.u32 2, %s29
        %p541 = scmp.lt.s32.totalorder %s30, 1
        %s542 = scalar_select %p541, %s30, 1
        %s543 = smul.addr %s542, 4
        %s544 = smul.addr %s543, 4
        %s545 = scalar_lea.vmem %s6, %s544
        %p546 = scmp.lt.s32.totalorder %s30, 1
        %s547 = scalar_select %p546, %s30, 1
        %s548 = scalar_lea.vmem %s7, %s547
        %p549 = scmp.lt.s32.totalorder %s30, 1
        %s550 = scalar_select %p549, %s30, 1
        %s551 = smul.addr %s550, 4
        %s552 = smul.addr %s551, 4
        %s553 = scalar_lea.vmem %s8, %s552
        %p554 = scmp.lt.s32.totalorder %s30, 1
        %s555 = scalar_select %p554, %s30, 1
        %s556 = smul.addr %s555, 8
        %s557 = scalar_lea.vmem %s9, %s556
        %p558 = scmp.lt.s32.totalorder %s30, 1
        %s559 = scalar_select %p558, %s30, 1
        %s560 = smul.addr %s559, 4
        %s561 = smul.addr %s560, 4
        %s562 = scalar_lea.vmem %s10, %s561
        %p563 = scmp.lt.s32.totalorder %s30, 1
        %s564 = scalar_select %p563, %s30, 1
        %s565 = scalar_lea.vmem %s11, %s564
        %p566 = scmp.lt.s32.totalorder %s30, 1
        %s567 = scalar_select %p566, %s30, 1
        %s568 = smul.addr %s567, 8
        %s569 = smul.addr %s568, 4
        %s570 = scalar_lea.vmem %s12, %s569
        %p572 = scmp.eq.s32.totalorder %s30, 0
        // Predicated region
        $region73: #{transformer_model_forward.1} parent=71 // pred_check
          %p573 = pneg %p572
        $region74: #{transformer_model_forward.1} parent=71 // pred_check_branch
          %575 = sbr.rel (%p573) target = $region76
        $region75: #{transformer_model_forward.1} parent=71 // pred_region
          %v576 = vld [vmem:[%s539] sm:$0xff]
          %v577 = vld [vmem:[%s539 + $0x8] sm:$0xff]
          %v578 = vpack.c.bf16 %v577, %v576
          %v579 = vld [vmem:[%s2] sm:$0xf]
          %v580 = vld [vmem:[%s2 + $0x4] sm:$0xf]
          %v581 = vld [vmem:[%s3] sm:$0x1]
          %v583 = vlaneseq
          %v584 = vshrl.u32 %v583, 7
          %v585 = vsub.s32 0, %v584
          %v586 = vrot.slane %v581, %v585
          %v590 = vunpack.c.l.b16 %v579
          %v591 = vunpack.c.l.b16 %v580
          %v592 = vpack.c.b16 %v591, %v590
          %vm594 = vcmask 130048
          %v596 = vsel %vm594, %v578, 0
          %598 = vmatprep.subr.bf16.mxu0 0
          %599 = vmatpush1.bf16.msra.mxu0 0
          %600 = vmatprep.subr.bf16.mxu0 0
          %601 = vmatpush1.bf16.msra.mxu0 0
          %602 = vmatprep.subr.bf16.mxu0 0
          %603 = vmatpush1.bf16.msra.mxu0 0
          %604 = vmatprep.subr.bf16.mxu0 0
          %605 = vmatpush1.bf16.msra.mxu0 0
          %606 = vmatprep.subr.bf16.mxu0 0
          %607 = vmatpush1.bf16.msra.mxu0 0
          %608 = vmatprep.subr.bf16.mxu0 0
          %609 = vmatpush1.bf16.msra.mxu0 0
          %610 = vmatprep.subr.bf16.mxu0 0
          %611 = vmatpush1.bf16.msra.mxu0 0
          %612 = vmatprep.subr.bf16.mxu0 0
          %613 = vmatpush1.bf16.msra.mxu0 %v592
          %614 = vmatprep.subr.bf16.mxu0 0
          %615 = vmatpush2.bf16.msra.mxu0 0
          %616 = vmatprep.subr.bf16.mxu0 0
          %617 = vmatpush2.bf16.msra.mxu0 0
          %618 = vmatprep.subr.bf16.mxu0 0
          %619 = vmatpush2.bf16.msra.mxu0 0
          %620 = vmatprep.subr.bf16.mxu0 0
          %621 = vmatpush2.bf16.msra.mxu0 0
          %622 = vmatprep.subr.bf16.mxu0 0
          %623 = vmatpush2.bf16.msra.mxu0 0
          %624 = vmatprep.subr.bf16.mxu0 0
          %625 = vmatpush2.bf16.msra.mxu0 0
          %626 = vmatprep.subr.bf16.mxu0 0
          %627 = vmatpush2.bf16.msra.mxu0 0
          %628 = vmatprep.subr.bf16.mxu0 0
          %629 = vmatpush2.bf16.msra.mxu0 0
          %630 = vmatprep.mubr.bf16.mxu0 0
          %631 = vmatmul.mubr.bf16.gmra.mxu0 %v596
          %v632 = vpop.f32.mrf.mxu0
          %v633 = vadd.f32 %v586, %v632
          %v634 = vpop.f32.mrf.mxu0
          %v635 = vpop.f32.mrf.mxu0
          %v636 = vadd.f32 %v586, %v635
          %v637 = vpop.f32.mrf.mxu0
          %638 = vdwg.mxu0
          %v639 = vld [vmem:[%s1] sm:$0xff]
          %v640 = vld [vmem:[%s1 + $0x8] sm:$0xff]
          %v641 = vadd.f32 %v633, %v639
          %v642 = vadd.f32 %v636, %v640
          %vm643 = vcmask 261120
          %644 = vst.msk [vmem:[#allocation2] sm:$0xff] %vm643, %v641
          %645 = vst.msk [vmem:[#allocation2 + $0x8] sm:$0xff] %vm643, %v642
        $region76: #{transformer_model_forward.1} parent=71 // pred_fallthru
          _
        %v646 = vld [vmem:[#allocation2] sm:$0xff]
        %v647 = vld [vmem:[#allocation2 + $0x8] sm:$0xff]
        %v648 = vpack.c.bf16 %v647, %v646
        %v649 = vld [vmem:[%s545] sm:$0xf]
        %v650 = vld [vmem:[%s545 + $0x4] sm:$0xf]
        %v651 = vld [vmem:[%s545 + $0x8] sm:$0xf]
        %v652 = vld [vmem:[%s545 + $0xc] sm:$0xf]
        %v653 = vld [vmem:[%s548] sm:$0x1]
        %v655 = vlaneseq
        %v656 = vshrl.u32 %v655, 7
        %v657 = vsub.s32 0, %v656
        %v658 = vrot.slane %v653, %v657
        %v664 = vunpack.c.l.b16 %v649
        %v665 = vunpack.c.l.b16 %v650
        %v666 = vunpack.c.l.b16 %v651
        %v667 = vunpack.c.l.b16 %v652
        %v668 = vpack.c.b16 %v665, %v664
        %v669 = vpack.c.b16 %v667, %v666
        %vm672 = vcmask 261120
        %v674 = vsel %vm672, %v648, 0
        %676 = vmatprep.subr.bf16.mxu0 0
        %677 = vmatpush1.bf16.msra.mxu0 0
        %678 = vmatprep.subr.bf16.mxu0 0
        %679 = vmatpush1.bf16.msra.mxu0 0
        %680 = vmatprep.subr.bf16.mxu0 0
        %681 = vmatpush1.bf16.msra.mxu0 0
        %682 = vmatprep.subr.bf16.mxu0 0
        %683 = vmatpush1.bf16.msra.mxu0 0
        %684 = vmatprep.subr.bf16.mxu0 0
        %685 = vmatpush1.bf16.msra.mxu0 0
        %686 = vmatprep.subr.bf16.mxu0 0
        %687 = vmatpush1.bf16.msra.mxu0 0
        %688 = vmatprep.subr.bf16.mxu0 0
        %689 = vmatpush1.bf16.msra.mxu0 %v669
        %690 = vmatprep.subr.bf16.mxu0 0
        %691 = vmatpush1.bf16.msra.mxu0 %v668
        %692 = vmatprep.subr.bf16.mxu0 0
        %693 = vmatpush2.bf16.msra.mxu0 0
        %694 = vmatprep.subr.bf16.mxu0 0
        %695 = vmatpush2.bf16.msra.mxu0 0
        %696 = vmatprep.subr.bf16.mxu0 0
        %697 = vmatpush2.bf16.msra.mxu0 0
        %698 = vmatprep.subr.bf16.mxu0 0
        %699 = vmatpush2.bf16.msra.mxu0 0
        %700 = vmatprep.subr.bf16.mxu0 0
        %701 = vmatpush2.bf16.msra.mxu0 0
        %702 = vmatprep.subr.bf16.mxu0 0
        %703 = vmatpush2.bf16.msra.mxu0 0
        %704 = vmatprep.subr.bf16.mxu0 0
        %705 = vmatpush2.bf16.msra.mxu0 0
        %706 = vmatprep.subr.bf16.mxu0 0
        %707 = vmatpush2.bf16.msra.mxu0 0
        %708 = vmatprep.mubr.bf16.mxu0 0
        %709 = vmatmul.mubr.bf16.gmra.mxu0 %v674
        %v710 = vpop.f32.mrf.mxu0
        %v711 = vadd.f32 %v658, %v710
        %v712 = vpop.f32.mrf.mxu0
        %v713 = vpop.f32.mrf.mxu0
        %v714 = vadd.f32 %v658, %v713
        %v715 = vpop.f32.mrf.mxu0
        %716 = vdwg.mxu0
        %v717 = vld [vmem:[%s557] sm:$0x3f]
        %v718 = vpack.c.bf16 %v711, %v711
        %v719 = vpack.c.bf16 %v714, %v714
        %721 = vrot.lane.b32.xlu0 %v718, 96
        %v722 = vpop.permute.xlu0 %721
        %vm723 = vcmask 64512
        %v725 = vsel %vm723, %v718, 0
        %v728 = vsel %vm723, %v722, 0
        %730 = vmatprep.subr.bf16.mxu0 0
        %731 = vmatpush1.bf16.xpose.msra.mxu0 0
        %732 = vmatprep.subr.bf16.mxu0 0
        %733 = vmatpush1.bf16.xpose.msra.mxu0 0
        %734 = vmatprep.subr.bf16.mxu0 0
        %735 = vmatpush1.bf16.xpose.msra.mxu0 0
        %736 = vmatprep.subr.bf16.mxu0 0
        %737 = vmatpush1.bf16.xpose.msra.mxu0 0
        %738 = vmatprep.subr.bf16.mxu0 0
        %739 = vmatpush1.bf16.xpose.msra.mxu0 0
        %740 = vmatprep.subr.bf16.mxu0 0
        %741 = vmatpush1.bf16.xpose.msra.mxu0 0
        %742 = vmatprep.subr.bf16.mxu0 0
        %743 = vmatpush1.bf16.xpose.msra.mxu0 0
        %744 = vmatprep.subr.bf16.mxu0 0
        %745 = vmatpush1.bf16.xpose.msra.mxu0 %v728
        %746 = vmatprep.subr.bf16.mxu0 0
        %747 = vmatpush2.bf16.xpose.msra.mxu0 0
        %748 = vmatprep.subr.bf16.mxu0 0
        %749 = vmatpush2.bf16.xpose.msra.mxu0 0
        %750 = vmatprep.subr.bf16.mxu0 0
        %751 = vmatpush2.bf16.xpose.msra.mxu0 0
        %752 = vmatprep.subr.bf16.mxu0 0
        %753 = vmatpush2.bf16.xpose.msra.mxu0 0
        %754 = vmatprep.subr.bf16.mxu0 0
        %755 = vmatpush2.bf16.xpose.msra.mxu0 0
        %756 = vmatprep.subr.bf16.mxu0 0
        %757 = vmatpush2.bf16.xpose.msra.mxu0 0
        %758 = vmatprep.subr.bf16.mxu0 0
        %759 = vmatpush2.bf16.xpose.msra.mxu0 0
        %760 = vmatprep.subr.bf16.mxu0 0
        %761 = vmatpush2.bf16.xpose.msra.mxu0 0
        %762 = vmatprep.mubr.bf16.mxu0 0
        %763 = vmatmul.mubr.bf16.gmra.mxu0 %v725
        %v764 = vpop.f32.mrf.mxu0
        %v765 = vadd.f32 0.0, %v764
        %v766 = vpop.f32.mrf.mxu0
        %v767 = vpop.f32.mrf.mxu0
        %v768 = vpop.f32.mrf.mxu0
        %769 = vdwg.mxu0
        %771 = vrot.lane.b32.xlu0 %v719, 96
        %v772 = vpop.permute.xlu0 %771
        %v774 = vsel %vm723, %v719, 0
        %v777 = vsel %vm723, %v772, 0
        %779 = vmatprep.subr.bf16.mxu0 0
        %780 = vmatpush1.bf16.xpose.msra.mxu0 0
        %781 = vmatprep.subr.bf16.mxu0 0
        %782 = vmatpush1.bf16.xpose.msra.mxu0 0
        %783 = vmatprep.subr.bf16.mxu0 0
        %784 = vmatpush1.bf16.xpose.msra.mxu0 0
        %785 = vmatprep.subr.bf16.mxu0 0
        %786 = vmatpush1.bf16.xpose.msra.mxu0 0
        %787 = vmatprep.subr.bf16.mxu0 0
        %788 = vmatpush1.bf16.xpose.msra.mxu0 0
        %789 = vmatprep.subr.bf16.mxu0 0
        %790 = vmatpush1.bf16.xpose.msra.mxu0 0
        %791 = vmatprep.subr.bf16.mxu0 0
        %792 = vmatpush1.bf16.xpose.msra.mxu0 0
        %793 = vmatprep.subr.bf16.mxu0 0
        %794 = vmatpush1.bf16.xpose.msra.mxu0 %v777
        %795 = vmatprep.subr.bf16.mxu0 0
        %796 = vmatpush2.bf16.xpose.msra.mxu0 0
        %797 = vmatprep.subr.bf16.mxu0 0
        %798 = vmatpush2.bf16.xpose.msra.mxu0 0
        %799 = vmatprep.subr.bf16.mxu0 0
        %800 = vmatpush2.bf16.xpose.msra.mxu0 0
        %801 = vmatprep.subr.bf16.mxu0 0
        %802 = vmatpush2.bf16.xpose.msra.mxu0 0
        %803 = vmatprep.subr.bf16.mxu0 0
        %804 = vmatpush2.bf16.xpose.msra.mxu0 0
        %805 = vmatprep.subr.bf16.mxu0 0
        %806 = vmatpush2.bf16.xpose.msra.mxu0 0
        %807 = vmatprep.subr.bf16.mxu0 0
        %808 = vmatpush2.bf16.xpose.msra.mxu0 0
        %809 = vmatprep.subr.bf16.mxu0 0
        %810 = vmatpush2.bf16.xpose.msra.mxu0 0
        %811 = vmatprep.mubr.bf16.mxu0 0
        %812 = vmatmul.mubr.bf16.gmra.mxu0 %v774
        %v813 = vpop.f32.mrf.mxu0
        %v814 = vadd.f32 0.0, %v813
        %v815 = vpop.f32.mrf.mxu0
        %v816 = vpop.f32.mrf.mxu0
        %v817 = vpop.f32.mrf.mxu0
        %818 = vdwg.mxu0
        %v819 = vmul.f32 %v765, 0.35355338
        %v820 = vmul.f32 %v814, 0.35355338
        %v821 = vsel %vm723, %v819, -inf
        %822 = vmax.xlane.f32.xlu0 %v821
        %v823 = vpop.xlane.xlu0 %822
        %v824 = vsel %vm723, %v820, -inf
        %825 = vmax.xlane.f32.xlu0 %v824
        %v826 = vpop.xlane.xlu0 %825
        %v827 = vsub.f32 %v819, %v823
        %v828 = vsub.f32 %v820, %v826
        %v829 = vmul.f32 %v827, 1.442695
        %v830 = vpow.pop %v829
        %v831 = vmul.f32 %v828, 1.442695
        %v832 = vpow.pop %v831
        %v833 = vsel %vm723, %v830, 0.0
        %834 = vadd.xlane.f32.xlu0 %v833
        %v835 = vpop.xlane.xlu0 %834
        %v836 = vsel %vm723, %v832, 0.0
        %837 = vadd.xlane.f32.xlu0 %v836
        %v838 = vpop.xlane.xlu0 %837
        %v839 = vrcp.pop %v835
        %v840 = vrcp.pop %v838
        %v841 = vmul.f32 %v830, %v839
        %v842 = vmul.f32 %v832, %v840
        %v843 = vpack.c.bf16 %v841, %v841
        %v844 = vpack.c.bf16 %v842, %v842
        %845 = vrot.lane.b32.xlu0 %v718, 64
        %v846 = vpop.permute.xlu0 %845
        %v848 = vsel %vm723, %v843, 0
        %vm850 = vcmask 1043456
        %v852 = vsel %vm850, %v846, 0
        %854 = vmatprep.subr.bf16.mxu0 0
        %855 = vmatpush1.bf16.msra.mxu0 0
        %856 = vmatprep.subr.bf16.mxu0 0
        %857 = vmatpush1.bf16.msra.mxu0 0
        %858 = vmatprep.subr.bf16.mxu0 0
        %859 = vmatpush1.bf16.msra.mxu0 0
        %860 = vmatprep.subr.bf16.mxu0 0
        %861 = vmatpush1.bf16.msra.mxu0 0
        %862 = vmatprep.subr.bf16.mxu0 0
        %863 = vmatpush1.bf16.msra.mxu0 0
        %864 = vmatprep.subr.bf16.mxu0 0
        %865 = vmatpush1.bf16.msra.mxu0 0
        %866 = vmatprep.subr.bf16.mxu0 0
        %867 = vmatpush1.bf16.msra.mxu0 0
        %868 = vmatprep.subr.bf16.mxu0 0
        %869 = vmatpush1.bf16.msra.mxu0 %v852
        %870 = vmatprep.subr.bf16.mxu0 0
        %871 = vmatpush2.bf16.msra.mxu0 0
        %872 = vmatprep.subr.bf16.mxu0 0
        %873 = vmatpush2.bf16.msra.mxu0 0
        %874 = vmatprep.subr.bf16.mxu0 0
        %875 = vmatpush2.bf16.msra.mxu0 0
        %876 = vmatprep.subr.bf16.mxu0 0
        %877 = vmatpush2.bf16.msra.mxu0 0
        %878 = vmatprep.subr.bf16.mxu0 0
        %879 = vmatpush2.bf16.msra.mxu0 0
        %880 = vmatprep.subr.bf16.mxu0 0
        %881 = vmatpush2.bf16.msra.mxu0 0
        %882 = vmatprep.subr.bf16.mxu0 0
        %883 = vmatpush2.bf16.msra.mxu0 0
        %884 = vmatprep.subr.bf16.mxu0 0
        %885 = vmatpush2.bf16.msra.mxu0 0
        %886 = vmatprep.mubr.bf16.mxu0 0
        %887 = vmatmul.mubr.bf16.gmra.mxu0 %v848
        %v888 = vpop.f32.mrf.mxu0
        %v889 = vadd.f32 0.0, %v888
        %v890 = vpop.f32.mrf.mxu0
        %v891 = vpop.f32.mrf.mxu0
        %v892 = vpop.f32.mrf.mxu0
        %893 = vdwg.mxu0
        %894 = vrot.lane.b32.xlu0 %v719, 64
        %v895 = vpop.permute.xlu0 %894
        %v897 = vsel %vm723, %v844, 0
        %v900 = vsel %vm850, %v895, 0
        %902 = vmatprep.subr.bf16.mxu0 0
        %903 = vmatpush1.bf16.msra.mxu0 0
        %904 = vmatprep.subr.bf16.mxu0 0
        %905 = vmatpush1.bf16.msra.mxu0 0
        %906 = vmatprep.subr.bf16.mxu0 0
        %907 = vmatpush1.bf16.msra.mxu0 0
        %908 = vmatprep.subr.bf16.mxu0 0
        %909 = vmatpush1.bf16.msra.mxu0 0
        %910 = vmatprep.subr.bf16.mxu0 0
        %911 = vmatpush1.bf16.msra.mxu0 0
        %912 = vmatprep.subr.bf16.mxu0 0
        %913 = vmatpush1.bf16.msra.mxu0 0
        %914 = vmatprep.subr.bf16.mxu0 0
        %915 = vmatpush1.bf16.msra.mxu0 0
        %916 = vmatprep.subr.bf16.mxu0 0
        %917 = vmatpush1.bf16.msra.mxu0 %v900
        %918 = vmatprep.subr.bf16.mxu0 0
        %919 = vmatpush2.bf16.msra.mxu0 0
        %920 = vmatprep.subr.bf16.mxu0 0
        %921 = vmatpush2.bf16.msra.mxu0 0
        %922 = vmatprep.subr.bf16.mxu0 0
        %923 = vmatpush2.bf16.msra.mxu0 0
        %924 = vmatprep.subr.bf16.mxu0 0
        %925 = vmatpush2.bf16.msra.mxu0 0
        %926 = vmatprep.subr.bf16.mxu0 0
        %927 = vmatpush2.bf16.msra.mxu0 0
        %928 = vmatprep.subr.bf16.mxu0 0
        %929 = vmatpush2.bf16.msra.mxu0 0
        %930 = vmatprep.subr.bf16.mxu0 0
        %931 = vmatpush2.bf16.msra.mxu0 0
        %932 = vmatprep.subr.bf16.mxu0 0
        %933 = vmatpush2.bf16.msra.mxu0 0
        %934 = vmatprep.mubr.bf16.mxu0 0
        %935 = vmatmul.mubr.bf16.gmra.mxu0 %v897
        %v936 = vpop.f32.mrf.mxu0
        %v937 = vadd.f32 0.0, %v936
        %v938 = vpop.f32.mrf.mxu0
        %v939 = vpop.f32.mrf.mxu0
        %v940 = vpop.f32.mrf.mxu0
        %941 = vdwg.mxu0
        %v942 = vpack.c.bf16 %v937, %v889
        %v943 = vld [vmem:[%s553] sm:$0xf]
        %944 = vrot.lane.b32.xlu0 %v718, 120
        %v945 = vpop.permute.xlu0 %944
        %946 = vrot.lane.b32.xlu0 %v718, 88
        %v947 = vpop.permute.xlu0 %946
        %v949 = vsel %vm723, %v945, 0
        %v952 = vsel %vm723, %v947, 0
        %954 = vmatprep.subr.bf16.mxu0 0
        %955 = vmatpush1.bf16.xpose.msra.mxu0 0
        %956 = vmatprep.subr.bf16.mxu0 0
        %957 = vmatpush1.bf16.xpose.msra.mxu0 0
        %958 = vmatprep.subr.bf16.mxu0 0
        %959 = vmatpush1.bf16.xpose.msra.mxu0 0
        %960 = vmatprep.subr.bf16.mxu0 0
        %961 = vmatpush1.bf16.xpose.msra.mxu0 0
        %962 = vmatprep.subr.bf16.mxu0 0
        %963 = vmatpush1.bf16.xpose.msra.mxu0 0
        %964 = vmatprep.subr.bf16.mxu0 0
        %965 = vmatpush1.bf16.xpose.msra.mxu0 0
        %966 = vmatprep.subr.bf16.mxu0 0
        %967 = vmatpush1.bf16.xpose.msra.mxu0 0
        %968 = vmatprep.subr.bf16.mxu0 0
        %969 = vmatpush1.bf16.xpose.msra.mxu0 %v952
        %970 = vmatprep.subr.bf16.mxu0 0
        %971 = vmatpush2.bf16.xpose.msra.mxu0 0
        %972 = vmatprep.subr.bf16.mxu0 0
        %973 = vmatpush2.bf16.xpose.msra.mxu0 0
        %974 = vmatprep.subr.bf16.mxu0 0
        %975 = vmatpush2.bf16.xpose.msra.mxu0 0
        %976 = vmatprep.subr.bf16.mxu0 0
        %977 = vmatpush2.bf16.xpose.msra.mxu0 0
        %978 = vmatprep.subr.bf16.mxu0 0
        %979 = vmatpush2.bf16.xpose.msra.mxu0 0
        %980 = vmatprep.subr.bf16.mxu0 0
        %981 = vmatpush2.bf16.xpose.msra.mxu0 0
        %982 = vmatprep.subr.bf16.mxu0 0
        %983 = vmatpush2.bf16.xpose.msra.mxu0 0
        %984 = vmatprep.subr.bf16.mxu0 0
        %985 = vmatpush2.bf16.xpose.msra.mxu0 0
        %986 = vmatprep.mubr.bf16.mxu0 0
        %987 = vmatmul.mubr.bf16.gmra.mxu0 %v949
        %v988 = vpop.f32.mrf.mxu0
        %v989 = vadd.f32 0.0, %v988
        %v990 = vpop.f32.mrf.mxu0
        %v991 = vpop.f32.mrf.mxu0
        %v992 = vpop.f32.mrf.mxu0
        %993 = vdwg.mxu0
        %994 = vrot.lane.b32.xlu0 %v719, 120
        %v995 = vpop.permute.xlu0 %994
        %996 = vrot.lane.b32.xlu0 %v719, 88
        %v997 = vpop.permute.xlu0 %996
        %v999 = vsel %vm723, %v995, 0
        %v1002 = vsel %vm723, %v997, 0
        %1004 = vmatprep.subr.bf16.mxu0 0
        %1005 = vmatpush1.bf16.xpose.msra.mxu0 0
        %1006 = vmatprep.subr.bf16.mxu0 0
        %1007 = vmatpush1.bf16.xpose.msra.mxu0 0
        %1008 = vmatprep.subr.bf16.mxu0 0
        %1009 = vmatpush1.bf16.xpose.msra.mxu0 0
        %1010 = vmatprep.subr.bf16.mxu0 0
        %1011 = vmatpush1.bf16.xpose.msra.mxu0 0
        %1012 = vmatprep.subr.bf16.mxu0 0
        %1013 = vmatpush1.bf16.xpose.msra.mxu0 0
        %1014 = vmatprep.subr.bf16.mxu0 0
        %1015 = vmatpush1.bf16.xpose.msra.mxu0 0
        %1016 = vmatprep.subr.bf16.mxu0 0
        %1017 = vmatpush1.bf16.xpose.msra.mxu0 0
        %1018 = vmatprep.subr.bf16.mxu0 0
        %1019 = vmatpush1.bf16.xpose.msra.mxu0 %v1002
        %1020 = vmatprep.subr.bf16.mxu0 0
        %1021 = vmatpush2.bf16.xpose.msra.mxu0 0
        %1022 = vmatprep.subr.bf16.mxu0 0
        %1023 = vmatpush2.bf16.xpose.msra.mxu0 0
        %1024 = vmatprep.subr.bf16.mxu0 0
        %1025 = vmatpush2.bf16.xpose.msra.mxu0 0
        %1026 = vmatprep.subr.bf16.mxu0 0
        %1027 = vmatpush2.bf16.xpose.msra.mxu0 0
        %1028 = vmatprep.subr.bf16.mxu0 0
        %1029 = vmatpush2.bf16.xpose.msra.mxu0 0
        %1030 = vmatprep.subr.bf16.mxu0 0
        %1031 = vmatpush2.bf16.xpose.msra.mxu0 0
        %1032 = vmatprep.subr.bf16.mxu0 0
        %1033 = vmatpush2.bf16.xpose.msra.mxu0 0
        %1034 = vmatprep.subr.bf16.mxu0 0
        %1035 = vmatpush2.bf16.xpose.msra.mxu0 0
        %1036 = vmatprep.mubr.bf16.mxu0 0
        %1037 = vmatmul.mubr.bf16.gmra.mxu0 %v999
        %v1038 = vpop.f32.mrf.mxu0
        %v1039 = vadd.f32 0.0, %v1038
        %v1040 = vpop.f32.mrf.mxu0
        %v1041 = vpop.f32.mrf.mxu0
        %v1042 = vpop.f32.mrf.mxu0
        %1043 = vdwg.mxu0
        %v1044 = vmul.f32 %v989, 0.35355338
        %v1045 = vmul.f32 %v1039, 0.35355338
        %v1046 = vsel %vm723, %v1044, -inf
        %1047 = vmax.xlane.f32.xlu0 %v1046
        %v1048 = vpop.xlane.xlu0 %1047
        %v1049 = vsel %vm723, %v1045, -inf
        %1050 = vmax.xlane.f32.xlu0 %v1049
        %v1051 = vpop.xlane.xlu0 %1050
        %v1052 = vsub.f32 %v1044, %v1048
        %v1053 = vsub.f32 %v1045, %v1051
        %v1054 = vmul.f32 %v1052, 1.442695
        %v1055 = vpow.pop %v1054
        %v1056 = vmul.f32 %v1053, 1.442695
        %v1057 = vpow.pop %v1056
        %v1058 = vsel %vm723, %v1055, 0.0
        %1059 = vadd.xlane.f32.xlu0 %v1058
        %v1060 = vpop.xlane.xlu0 %1059
        %v1061 = vsel %vm723, %v1057, 0.0
        %1062 = vadd.xlane.f32.xlu0 %v1061
        %v1063 = vpop.xlane.xlu0 %1062
        %v1064 = vrcp.pop %v1060
        %v1065 = vrcp.pop %v1063
        %v1066 = vmul.f32 %v1055, %v1064
        %v1067 = vmul.f32 %v1057, %v1065
        %v1068 = vpack.c.bf16 %v1066, %v1066
        %v1069 = vpack.c.bf16 %v1067, %v1067
        %1070 = vrot.lane.b32.xlu0 %v718, 56
        %v1071 = vpop.permute.xlu0 %1070
        %v1073 = vsel %vm723, %v1068, 0
        %v1076 = vsel %vm850, %v1071, 0
        %1078 = vmatprep.subr.bf16.mxu0 0
        %1079 = vmatpush1.bf16.msra.mxu0 0
        %1080 = vmatprep.subr.bf16.mxu0 0
        %1081 = vmatpush1.bf16.msra.mxu0 0
        %1082 = vmatprep.subr.bf16.mxu0 0
        %1083 = vmatpush1.bf16.msra.mxu0 0
        %1084 = vmatprep.subr.bf16.mxu0 0
        %1085 = vmatpush1.bf16.msra.mxu0 0
        %1086 = vmatprep.subr.bf16.mxu0 0
        %1087 = vmatpush1.bf16.msra.mxu0 0
        %1088 = vmatprep.subr.bf16.mxu0 0
        %1089 = vmatpush1.bf16.msra.mxu0 0
        %1090 = vmatprep.subr.bf16.mxu0 0
        %1091 = vmatpush1.bf16.msra.mxu0 0
        %1092 = vmatprep.subr.bf16.mxu0 0
        %1093 = vmatpush1.bf16.msra.mxu0 %v1076
        %1094 = vmatprep.subr.bf16.mxu0 0
        %1095 = vmatpush2.bf16.msra.mxu0 0
        %1096 = vmatprep.subr.bf16.mxu0 0
        %1097 = vmatpush2.bf16.msra.mxu0 0
        %1098 = vmatprep.subr.bf16.mxu0 0
        %1099 = vmatpush2.bf16.msra.mxu0 0
        %1100 = vmatprep.subr.bf16.mxu0 0
        %1101 = vmatpush2.bf16.msra.mxu0 0
        %1102 = vmatprep.subr.bf16.mxu0 0
        %1103 = vmatpush2.bf16.msra.mxu0 0
        %1104 = vmatprep.subr.bf16.mxu0 0
        %1105 = vmatpush2.bf16.msra.mxu0 0
        %1106 = vmatprep.subr.bf16.mxu0 0
        %1107 = vmatpush2.bf16.msra.mxu0 0
        %1108 = vmatprep.subr.bf16.mxu0 0
        %1109 = vmatpush2.bf16.msra.mxu0 0
        %1110 = vmatprep.mubr.bf16.mxu0 0
        %1111 = vmatmul.mubr.bf16.gmra.mxu0 %v1073
        %v1112 = vpop.f32.mrf.mxu0
        %v1113 = vadd.f32 0.0, %v1112
        %v1114 = vpop.f32.mrf.mxu0
        %v1115 = vpop.f32.mrf.mxu0
        %v1116 = vpop.f32.mrf.mxu0
        %1117 = vdwg.mxu0
        %1118 = vrot.lane.b32.xlu0 %v719, 56
        %v1119 = vpop.permute.xlu0 %1118
        %v1121 = vsel %vm723, %v1069, 0
        %v1124 = vsel %vm850, %v1119, 0
        %1126 = vmatprep.subr.bf16.mxu0 0
        %1127 = vmatpush1.bf16.msra.mxu0 0
        %1128 = vmatprep.subr.bf16.mxu0 0
        %1129 = vmatpush1.bf16.msra.mxu0 0
        %1130 = vmatprep.subr.bf16.mxu0 0
        %1131 = vmatpush1.bf16.msra.mxu0 0
        %1132 = vmatprep.subr.bf16.mxu0 0
        %1133 = vmatpush1.bf16.msra.mxu0 0
        %1134 = vmatprep.subr.bf16.mxu0 0
        %1135 = vmatpush1.bf16.msra.mxu0 0
        %1136 = vmatprep.subr.bf16.mxu0 0
        %1137 = vmatpush1.bf16.msra.mxu0 0
        %1138 = vmatprep.subr.bf16.mxu0 0
        %1139 = vmatpush1.bf16.msra.mxu0 0
        %1140 = vmatprep.subr.bf16.mxu0 0
        %1141 = vmatpush1.bf16.msra.mxu0 %v1124
        %1142 = vmatprep.subr.bf16.mxu0 0
        %1143 = vmatpush2.bf16.msra.mxu0 0
        %1144 = vmatprep.subr.bf16.mxu0 0
        %1145 = vmatpush2.bf16.msra.mxu0 0
        %1146 = vmatprep.subr.bf16.mxu0 0
        %1147 = vmatpush2.bf16.msra.mxu0 0
        %1148 = vmatprep.subr.bf16.mxu0 0
        %1149 = vmatpush2.bf16.msra.mxu0 0
        %1150 = vmatprep.subr.bf16.mxu0 0
        %1151 = vmatpush2.bf16.msra.mxu0 0
        %1152 = vmatprep.subr.bf16.mxu0 0
        %1153 = vmatpush2.bf16.msra.mxu0 0
        %1154 = vmatprep.subr.bf16.mxu0 0
        %1155 = vmatpush2.bf16.msra.mxu0 0
        %1156 = vmatprep.subr.bf16.mxu0 0
        %1157 = vmatpush2.bf16.msra.mxu0 0
        %1158 = vmatprep.mubr.bf16.mxu0 0
        %1159 = vmatmul.mubr.bf16.gmra.mxu0 %v1121
        %v1160 = vpop.f32.mrf.mxu0
        %v1161 = vadd.f32 0.0, %v1160
        %v1162 = vpop.f32.mrf.mxu0
        %v1163 = vpop.f32.mrf.mxu0
        %v1164 = vpop.f32.mrf.mxu0
        %1165 = vdwg.mxu0
        %v1166 = vpack.c.bf16 %v1161, %v1113
        %s1167 = scalar_lea.vmem %s553, 4
        %v1168 = vld [vmem:[%s1167] sm:$0xf]
        %v1170 = vsel %vm723, %v1166, 0
        %v1173 = vsel %vm850, %v1168, 0
        %1175 = vmatprep.subr.bf16.mxu0 0
        %1176 = vmatpush1.bf16.msra.mxu0 0
        %1177 = vmatprep.subr.bf16.mxu0 0
        %1178 = vmatpush1.bf16.msra.mxu0 0
        %1179 = vmatprep.subr.bf16.mxu0 0
        %1180 = vmatpush1.bf16.msra.mxu0 0
        %1181 = vmatprep.subr.bf16.mxu0 0
        %1182 = vmatpush1.bf16.msra.mxu0 0
        %1183 = vmatprep.subr.bf16.mxu0 0
        %1184 = vmatpush1.bf16.msra.mxu0 0
        %1185 = vmatprep.subr.bf16.mxu0 0
        %1186 = vmatpush1.bf16.msra.mxu0 0
        %1187 = vmatprep.subr.bf16.mxu0 0
        %1188 = vmatpush1.bf16.msra.mxu0 0
        %1189 = vmatprep.subr.bf16.mxu0 0
        %1190 = vmatpush1.bf16.msra.mxu0 %v1173
        %1191 = vmatprep.subr.bf16.mxu0 0
        %1192 = vmatpush2.bf16.msra.mxu0 0
        %1193 = vmatprep.subr.bf16.mxu0 0
        %1194 = vmatpush2.bf16.msra.mxu0 0
        %1195 = vmatprep.subr.bf16.mxu0 0
        %1196 = vmatpush2.bf16.msra.mxu0 0
        %1197 = vmatprep.subr.bf16.mxu0 0
        %1198 = vmatpush2.bf16.msra.mxu0 0
        %1199 = vmatprep.subr.bf16.mxu0 0
        %1200 = vmatpush2.bf16.msra.mxu0 0
        %1201 = vmatprep.subr.bf16.mxu0 0
        %1202 = vmatpush2.bf16.msra.mxu0 0
        %1203 = vmatprep.subr.bf16.mxu0 0
        %1204 = vmatpush2.bf16.msra.mxu0 0
        %1205 = vmatprep.subr.bf16.mxu0 0
        %1206 = vmatpush2.bf16.msra.mxu0 0
        %1207 = vmatprep.mubr.bf16.mxu0 0
        %1208 = vmatmul.mubr.bf16.gmra.mxu0 %v1170
        %v1209 = vpop.f32.mrf.mxu0
        %v1210 = vadd.f32 0.0, %v1209
        %v1211 = vpop.f32.mrf.mxu0
        %v1212 = vpop.f32.mrf.mxu0
        %v1213 = vadd.f32 0.0, %v1212
        %v1214 = vpop.f32.mrf.mxu0
        %1215 = vdwg.mxu0
        %v1217 = vsel %vm723, %v942, 0
        %v1220 = vsel %vm850, %v943, 0
        %1222 = vmatprep.subr.bf16.mxu0 0
        %1223 = vmatpush1.bf16.msra.mxu0 0
        %1224 = vmatprep.subr.bf16.mxu0 0
        %1225 = vmatpush1.bf16.msra.mxu0 0
        %1226 = vmatprep.subr.bf16.mxu0 0
        %1227 = vmatpush1.bf16.msra.mxu0 0
        %1228 = vmatprep.subr.bf16.mxu0 0
        %1229 = vmatpush1.bf16.msra.mxu0 0
        %1230 = vmatprep.subr.bf16.mxu0 0
        %1231 = vmatpush1.bf16.msra.mxu0 0
        %1232 = vmatprep.subr.bf16.mxu0 0
        %1233 = vmatpush1.bf16.msra.mxu0 0
        %1234 = vmatprep.subr.bf16.mxu0 0
        %1235 = vmatpush1.bf16.msra.mxu0 0
        %1236 = vmatprep.subr.bf16.mxu0 0
        %1237 = vmatpush1.bf16.msra.mxu0 %v1220
        %1238 = vmatprep.subr.bf16.mxu0 0
        %1239 = vmatpush2.bf16.msra.mxu0 0
        %1240 = vmatprep.subr.bf16.mxu0 0
        %1241 = vmatpush2.bf16.msra.mxu0 0
        %1242 = vmatprep.subr.bf16.mxu0 0
        %1243 = vmatpush2.bf16.msra.mxu0 0
        %1244 = vmatprep.subr.bf16.mxu0 0
        %1245 = vmatpush2.bf16.msra.mxu0 0
        %1246 = vmatprep.subr.bf16.mxu0 0
        %1247 = vmatpush2.bf16.msra.mxu0 0
        %1248 = vmatprep.subr.bf16.mxu0 0
        %1249 = vmatpush2.bf16.msra.mxu0 0
        %1250 = vmatprep.subr.bf16.mxu0 0
        %1251 = vmatpush2.bf16.msra.mxu0 0
        %1252 = vmatprep.subr.bf16.mxu0 0
        %1253 = vmatpush2.bf16.msra.mxu0 0
        %1254 = vmatprep.mubr.bf16.mxu0 0
        %1255 = vmatmul.mubr.bf16.gmra.mxu0 %v1217
        %v1256 = vpop.f32.mrf.mxu0
        %v1257 = vadd.f32 %v1210, %v1256
        %v1258 = vpop.f32.mrf.mxu0
        %v1259 = vpop.f32.mrf.mxu0
        %v1260 = vadd.f32 %v1213, %v1259
        %v1261 = vpop.f32.mrf.mxu0
        %1262 = vdwg.mxu0
        %1263 = vrot.lane.b32.xlu0 %v718, 112
        %v1264 = vpop.permute.xlu0 %1263
        %1265 = vrot.lane.b32.xlu0 %v718, 80
        %v1266 = vpop.permute.xlu0 %1265
        %v1268 = vsel %vm723, %v1264, 0
        %v1271 = vsel %vm723, %v1266, 0
        %1273 = vmatprep.subr.bf16.mxu0 0
        %1274 = vmatpush1.bf16.xpose.msra.mxu0 0
        %1275 = vmatprep.subr.bf16.mxu0 0
        %1276 = vmatpush1.bf16.xpose.msra.mxu0 0
        %1277 = vmatprep.subr.bf16.mxu0 0
        %1278 = vmatpush1.bf16.xpose.msra.mxu0 0
        %1279 = vmatprep.subr.bf16.mxu0 0
        %1280 = vmatpush1.bf16.xpose.msra.mxu0 0
        %1281 = vmatprep.subr.bf16.mxu0 0
        %1282 = vmatpush1.bf16.xpose.msra.mxu0 0
        %1283 = vmatprep.subr.bf16.mxu0 0
        %1284 = vmatpush1.bf16.xpose.msra.mxu0 0
        %1285 = vmatprep.subr.bf16.mxu0 0
        %1286 = vmatpush1.bf16.xpose.msra.mxu0 0
        %1287 = vmatprep.subr.bf16.mxu0 0
        %1288 = vmatpush1.bf16.xpose.msra.mxu0 %v1271
        %1289 = vmatprep.subr.bf16.mxu0 0
        %1290 = vmatpush2.bf16.xpose.msra.mxu0 0
        %1291 = vmatprep.subr.bf16.mxu0 0
        %1292 = vmatpush2.bf16.xpose.msra.mxu0 0
        %1293 = vmatprep.subr.bf16.mxu0 0
        %1294 = vmatpush2.bf16.xpose.msra.mxu0 0
        %1295 = vmatprep.subr.bf16.mxu0 0
        %1296 = vmatpush2.bf16.xpose.msra.mxu0 0
        %1297 = vmatprep.subr.bf16.mxu0 0
        %1298 = vmatpush2.bf16.xpose.msra.mxu0 0
        %1299 = vmatprep.subr.bf16.mxu0 0
        %1300 = vmatpush2.bf16.xpose.msra.mxu0 0
        %1301 = vmatprep.subr.bf16.mxu0 0
        %1302 = vmatpush2.bf16.xpose.msra.mxu0 0
        %1303 = vmatprep.subr.bf16.mxu0 0
        %1304 = vmatpush2.bf16.xpose.msra.mxu0 0
        %1305 = vmatprep.mubr.bf16.mxu0 0
        %1306 = vmatmul.mubr.bf16.gmra.mxu0 %v1268
        %v1307 = vpop.f32.mrf.mxu0
        %v1308 = vadd.f32 0.0, %v1307
        %v1309 = vpop.f32.mrf.mxu0
        %v1310 = vpop.f32.mrf.mxu0
        %v1311 = vpop.f32.mrf.mxu0
        %1312 = vdwg.mxu0
        %1313 = vrot.lane.b32.xlu0 %v719, 112
        %v1314 = vpop.permute.xlu0 %1313
        %1315 = vrot.lane.b32.xlu0 %v719, 80
        %v1316 = vpop.permute.xlu0 %1315
        %v1318 = vsel %vm723, %v1314, 0
        %v1321 = vsel %vm723, %v1316, 0
        %1323 = vmatprep.subr.bf16.mxu0 0
        %1324 = vmatpush1.bf16.xpose.msra.mxu0 0
        %1325 = vmatprep.subr.bf16.mxu0 0
        %1326 = vmatpush1.bf16.xpose.msra.mxu0 0
        %1327 = vmatprep.subr.bf16.mxu0 0
        %1328 = vmatpush1.bf16.xpose.msra.mxu0 0
        %1329 = vmatprep.subr.bf16.mxu0 0
        %1330 = vmatpush1.bf16.xpose.msra.mxu0 0
        %1331 = vmatprep.subr.bf16.mxu0 0
        %1332 = vmatpush1.bf16.xpose.msra.mxu0 0
        %1333 = vmatprep.subr.bf16.mxu0 0
        %1334 = vmatpush1.bf16.xpose.msra.mxu0 0
        %1335 = vmatprep.subr.bf16.mxu0 0
        %1336 = vmatpush1.bf16.xpose.msra.mxu0 0
        %1337 = vmatprep.subr.bf16.mxu0 0
        %1338 = vmatpush1.bf16.xpose.msra.mxu0 %v1321
        %1339 = vmatprep.subr.bf16.mxu0 0
        %1340 = vmatpush2.bf16.xpose.msra.mxu0 0
        %1341 = vmatprep.subr.bf16.mxu0 0
        %1342 = vmatpush2.bf16.xpose.msra.mxu0 0
        %1343 = vmatprep.subr.bf16.mxu0 0
        %1344 = vmatpush2.bf16.xpose.msra.mxu0 0
        %1345 = vmatprep.subr.bf16.mxu0 0
        %1346 = vmatpush2.bf16.xpose.msra.mxu0 0
        %1347 = vmatprep.subr.bf16.mxu0 0
        %1348 = vmatpush2.bf16.xpose.msra.mxu0 0
        %1349 = vmatprep.subr.bf16.mxu0 0
        %1350 = vmatpush2.bf16.xpose.msra.mxu0 0
        %1351 = vmatprep.subr.bf16.mxu0 0
        %1352 = vmatpush2.bf16.xpose.msra.mxu0 0
        %1353 = vmatprep.subr.bf16.mxu0 0
        %1354 = vmatpush2.bf16.xpose.msra.mxu0 0
        %1355 = vmatprep.mubr.bf16.mxu0 0
        %1356 = vmatmul.mubr.bf16.gmra.mxu0 %v1318
        %v1357 = vpop.f32.mrf.mxu0
        %v1358 = vadd.f32 0.0, %v1357
        %v1359 = vpop.f32.mrf.mxu0
        %v1360 = vpop.f32.mrf.mxu0
        %v1361 = vpop.f32.mrf.mxu0
        %1362 = vdwg.mxu0
        %v1363 = vmul.f32 %v1308, 0.35355338
        %v1364 = vmul.f32 %v1358, 0.35355338
        %v1365 = vsel %vm723, %v1363, -inf
        %1366 = vmax.xlane.f32.xlu0 %v1365
        %v1367 = vpop.xlane.xlu0 %1366
        %v1368 = vsel %vm723, %v1364, -inf
        %1369 = vmax.xlane.f32.xlu0 %v1368
        %v1370 = vpop.xlane.xlu0 %1369
        %v1371 = vsub.f32 %v1363, %v1367
        %v1372 = vsub.f32 %v1364, %v1370
        %v1373 = vmul.f32 %v1371, 1.442695
        %v1374 = vpow.pop %v1373
        %v1375 = vmul.f32 %v1372, 1.442695
        %v1376 = vpow.pop %v1375
        %v1377 = vsel %vm723, %v1374, 0.0
        %1378 = vadd.xlane.f32.xlu0 %v1377
        %v1379 = vpop.xlane.xlu0 %1378
        %v1380 = vsel %vm723, %v1376, 0.0
        %1381 = vadd.xlane.f32.xlu0 %v1380
        %v1382 = vpop.xlane.xlu0 %1381
        %v1383 = vrcp.pop %v1379
        %v1384 = vrcp.pop %v1382
        %v1385 = vmul.f32 %v1374, %v1383
        %v1386 = vmul.f32 %v1376, %v1384
        %v1387 = vpack.c.bf16 %v1385, %v1385
        %v1388 = vpack.c.bf16 %v1386, %v1386
        %1389 = vrot.lane.b32.xlu0 %v718, 48
        %v1390 = vpop.permute.xlu0 %1389
        %v1392 = vsel %vm723, %v1387, 0
        %v1395 = vsel %vm850, %v1390, 0
        %1397 = vmatprep.subr.bf16.mxu0 0
        %1398 = vmatpush1.bf16.msra.mxu0 0
        %1399 = vmatprep.subr.bf16.mxu0 0
        %1400 = vmatpush1.bf16.msra.mxu0 0
        %1401 = vmatprep.subr.bf16.mxu0 0
        %1402 = vmatpush1.bf16.msra.mxu0 0
        %1403 = vmatprep.subr.bf16.mxu0 0
        %1404 = vmatpush1.bf16.msra.mxu0 0
        %1405 = vmatprep.subr.bf16.mxu0 0
        %1406 = vmatpush1.bf16.msra.mxu0 0
        %1407 = vmatprep.subr.bf16.mxu0 0
        %1408 = vmatpush1.bf16.msra.mxu0 0
        %1409 = vmatprep.subr.bf16.mxu0 0
        %1410 = vmatpush1.bf16.msra.mxu0 0
        %1411 = vmatprep.subr.bf16.mxu0 0
        %1412 = vmatpush1.bf16.msra.mxu0 %v1395
        %1413 = vmatprep.subr.bf16.mxu0 0
        %1414 = vmatpush2.bf16.msra.mxu0 0
        %1415 = vmatprep.subr.bf16.mxu0 0
        %1416 = vmatpush2.bf16.msra.mxu0 0
        %1417 = vmatprep.subr.bf16.mxu0 0
        %1418 = vmatpush2.bf16.msra.mxu0 0
        %1419 = vmatprep.subr.bf16.mxu0 0
        %1420 = vmatpush2.bf16.msra.mxu0 0
        %1421 = vmatprep.subr.bf16.mxu0 0
        %1422 = vmatpush2.bf16.msra.mxu0 0
        %1423 = vmatprep.subr.bf16.mxu0 0
        %1424 = vmatpush2.bf16.msra.mxu0 0
        %1425 = vmatprep.subr.bf16.mxu0 0
        %1426 = vmatpush2.bf16.msra.mxu0 0
        %1427 = vmatprep.subr.bf16.mxu0 0
        %1428 = vmatpush2.bf16.msra.mxu0 0
        %1429 = vmatprep.mubr.bf16.mxu0 0
        %1430 = vmatmul.mubr.bf16.gmra.mxu0 %v1392
        %v1431 = vpop.f32.mrf.mxu0
        %v1432 = vadd.f32 0.0, %v1431
        %v1433 = vpop.f32.mrf.mxu0
        %v1434 = vpop.f32.mrf.mxu0
        %v1435 = vpop.f32.mrf.mxu0
        %1436 = vdwg.mxu0
        %1437 = vrot.lane.b32.xlu0 %v719, 48
        %v1438 = vpop.permute.xlu0 %1437
        %v1440 = vsel %vm723, %v1388, 0
        %v1443 = vsel %vm850, %v1438, 0
        %1445 = vmatprep.subr.bf16.mxu0 0
        %1446 = vmatpush1.bf16.msra.mxu0 0
        %1447 = vmatprep.subr.bf16.mxu0 0
        %1448 = vmatpush1.bf16.msra.mxu0 0
        %1449 = vmatprep.subr.bf16.mxu0 0
        %1450 = vmatpush1.bf16.msra.mxu0 0
        %1451 = vmatprep.subr.bf16.mxu0 0
        %1452 = vmatpush1.bf16.msra.mxu0 0
        %1453 = vmatprep.subr.bf16.mxu0 0
        %1454 = vmatpush1.bf16.msra.mxu0 0
        %1455 = vmatprep.subr.bf16.mxu0 0
        %1456 = vmatpush1.bf16.msra.mxu0 0
        %1457 = vmatprep.subr.bf16.mxu0 0
        %1458 = vmatpush1.bf16.msra.mxu0 0
        %1459 = vmatprep.subr.bf16.mxu0 0
        %1460 = vmatpush1.bf16.msra.mxu0 %v1443
        %1461 = vmatprep.subr.bf16.mxu0 0
        %1462 = vmatpush2.bf16.msra.mxu0 0
        %1463 = vmatprep.subr.bf16.mxu0 0
        %1464 = vmatpush2.bf16.msra.mxu0 0
        %1465 = vmatprep.subr.bf16.mxu0 0
        %1466 = vmatpush2.bf16.msra.mxu0 0
        %1467 = vmatprep.subr.bf16.mxu0 0
        %1468 = vmatpush2.bf16.msra.mxu0 0
        %1469 = vmatprep.subr.bf16.mxu0 0
        %1470 = vmatpush2.bf16.msra.mxu0 0
        %1471 = vmatprep.subr.bf16.mxu0 0
        %1472 = vmatpush2.bf16.msra.mxu0 0
        %1473 = vmatprep.subr.bf16.mxu0 0
        %1474 = vmatpush2.bf16.msra.mxu0 0
        %1475 = vmatprep.subr.bf16.mxu0 0
        %1476 = vmatpush2.bf16.msra.mxu0 0
        %1477 = vmatprep.mubr.bf16.mxu0 0
        %1478 = vmatmul.mubr.bf16.gmra.mxu0 %v1440
        %v1479 = vpop.f32.mrf.mxu0
        %v1480 = vadd.f32 0.0, %v1479
        %v1481 = vpop.f32.mrf.mxu0
        %v1482 = vpop.f32.mrf.mxu0
        %v1483 = vpop.f32.mrf.mxu0
        %1484 = vdwg.mxu0
        %v1485 = vpack.c.bf16 %v1480, %v1432
        %s1486 = scalar_lea.vmem %s553, 8
        %v1487 = vld [vmem:[%s1486] sm:$0xf]
        %v1489 = vsel %vm723, %v1485, 0
        %v1492 = vsel %vm850, %v1487, 0
        %1494 = vmatprep.subr.bf16.mxu0 0
        %1495 = vmatpush1.bf16.msra.mxu0 0
        %1496 = vmatprep.subr.bf16.mxu0 0
        %1497 = vmatpush1.bf16.msra.mxu0 0
        %1498 = vmatprep.subr.bf16.mxu0 0
        %1499 = vmatpush1.bf16.msra.mxu0 0
        %1500 = vmatprep.subr.bf16.mxu0 0
        %1501 = vmatpush1.bf16.msra.mxu0 0
        %1502 = vmatprep.subr.bf16.mxu0 0
        %1503 = vmatpush1.bf16.msra.mxu0 0
        %1504 = vmatprep.subr.bf16.mxu0 0
        %1505 = vmatpush1.bf16.msra.mxu0 0
        %1506 = vmatprep.subr.bf16.mxu0 0
        %1507 = vmatpush1.bf16.msra.mxu0 0
        %1508 = vmatprep.subr.bf16.mxu0 0
        %1509 = vmatpush1.bf16.msra.mxu0 %v1492
        %1510 = vmatprep.subr.bf16.mxu0 0
        %1511 = vmatpush2.bf16.msra.mxu0 0
        %1512 = vmatprep.subr.bf16.mxu0 0
        %1513 = vmatpush2.bf16.msra.mxu0 0
        %1514 = vmatprep.subr.bf16.mxu0 0
        %1515 = vmatpush2.bf16.msra.mxu0 0
        %1516 = vmatprep.subr.bf16.mxu0 0
        %1517 = vmatpush2.bf16.msra.mxu0 0
        %1518 = vmatprep.subr.bf16.mxu0 0
        %1519 = vmatpush2.bf16.msra.mxu0 0
        %1520 = vmatprep.subr.bf16.mxu0 0
        %1521 = vmatpush2.bf16.msra.mxu0 0
        %1522 = vmatprep.subr.bf16.mxu0 0
        %1523 = vmatpush2.bf16.msra.mxu0 0
        %1524 = vmatprep.subr.bf16.mxu0 0
        %1525 = vmatpush2.bf16.msra.mxu0 0
        %1526 = vmatprep.mubr.bf16.mxu0 0
        %1527 = vmatmul.mubr.bf16.gmra.mxu0 %v1489
        %v1528 = vpop.f32.mrf.mxu0
        %v1529 = vadd.f32 0.0, %v1528
        %v1530 = vpop.f32.mrf.mxu0
        %v1531 = vpop.f32.mrf.mxu0
        %v1532 = vadd.f32 0.0, %v1531
        %v1533 = vpop.f32.mrf.mxu0
        %1534 = vdwg.mxu0
        %v1535 = vadd.f32 %v1257, %v1529
        %v1536 = vadd.f32 %v1260, %v1532
        %1537 = vrot.lane.b32.xlu0 %v718, 104
        %v1538 = vpop.permute.xlu0 %1537
        %1539 = vrot.lane.b32.xlu0 %v718, 72
        %v1540 = vpop.permute.xlu0 %1539
        %v1542 = vsel %vm723, %v1538, 0
        %v1545 = vsel %vm723, %v1540, 0
        %1547 = vmatprep.subr.bf16.mxu0 0
        %1548 = vmatpush1.bf16.xpose.msra.mxu0 0
        %1549 = vmatprep.subr.bf16.mxu0 0
        %1550 = vmatpush1.bf16.xpose.msra.mxu0 0
        %1551 = vmatprep.subr.bf16.mxu0 0
        %1552 = vmatpush1.bf16.xpose.msra.mxu0 0
        %1553 = vmatprep.subr.bf16.mxu0 0
        %1554 = vmatpush1.bf16.xpose.msra.mxu0 0
        %1555 = vmatprep.subr.bf16.mxu0 0
        %1556 = vmatpush1.bf16.xpose.msra.mxu0 0
        %1557 = vmatprep.subr.bf16.mxu0 0
        %1558 = vmatpush1.bf16.xpose.msra.mxu0 0
        %1559 = vmatprep.subr.bf16.mxu0 0
        %1560 = vmatpush1.bf16.xpose.msra.mxu0 0
        %1561 = vmatprep.subr.bf16.mxu0 0
        %1562 = vmatpush1.bf16.xpose.msra.mxu0 %v1545
        %1563 = vmatprep.subr.bf16.mxu0 0
        %1564 = vmatpush2.bf16.xpose.msra.mxu0 0
        %1565 = vmatprep.subr.bf16.mxu0 0
        %1566 = vmatpush2.bf16.xpose.msra.mxu0 0
        %1567 = vmatprep.subr.bf16.mxu0 0
        %1568 = vmatpush2.bf16.xpose.msra.mxu0 0
        %1569 = vmatprep.subr.bf16.mxu0 0
        %1570 = vmatpush2.bf16.xpose.msra.mxu0 0
        %1571 = vmatprep.subr.bf16.mxu0 0
        %1572 = vmatpush2.bf16.xpose.msra.mxu0 0
        %1573 = vmatprep.subr.bf16.mxu0 0
        %1574 = vmatpush2.bf16.xpose.msra.mxu0 0
        %1575 = vmatprep.subr.bf16.mxu0 0
        %1576 = vmatpush2.bf16.xpose.msra.mxu0 0
        %1577 = vmatprep.subr.bf16.mxu0 0
        %1578 = vmatpush2.bf16.xpose.msra.mxu0 0
        %1579 = vmatprep.mubr.bf16.mxu0 0
        %1580 = vmatmul.mubr.bf16.gmra.mxu0 %v1542
        %v1581 = vpop.f32.mrf.mxu0
        %v1582 = vadd.f32 0.0, %v1581
        %v1583 = vpop.f32.mrf.mxu0
        %v1584 = vpop.f32.mrf.mxu0
        %v1585 = vpop.f32.mrf.mxu0
        %1586 = vdwg.mxu0
        %1587 = vrot.lane.b32.xlu0 %v719, 104
        %v1588 = vpop.permute.xlu0 %1587
        %1589 = vrot.lane.b32.xlu0 %v719, 72
        %v1590 = vpop.permute.xlu0 %1589
        %v1592 = vsel %vm723, %v1588, 0
        %v1595 = vsel %vm723, %v1590, 0
        %1597 = vmatprep.subr.bf16.mxu0 0
        %1598 = vmatpush1.bf16.xpose.msra.mxu0 0
        %1599 = vmatprep.subr.bf16.mxu0 0
        %1600 = vmatpush1.bf16.xpose.msra.mxu0 0
        %1601 = vmatprep.subr.bf16.mxu0 0
        %1602 = vmatpush1.bf16.xpose.msra.mxu0 0
        %1603 = vmatprep.subr.bf16.mxu0 0
        %1604 = vmatpush1.bf16.xpose.msra.mxu0 0
        %1605 = vmatprep.subr.bf16.mxu0 0
        %1606 = vmatpush1.bf16.xpose.msra.mxu0 0
        %1607 = vmatprep.subr.bf16.mxu0 0
        %1608 = vmatpush1.bf16.xpose.msra.mxu0 0
        %1609 = vmatprep.subr.bf16.mxu0 0
        %1610 = vmatpush1.bf16.xpose.msra.mxu0 0
        %1611 = vmatprep.subr.bf16.mxu0 0
        %1612 = vmatpush1.bf16.xpose.msra.mxu0 %v1595
        %1613 = vmatprep.subr.bf16.mxu0 0
        %1614 = vmatpush2.bf16.xpose.msra.mxu0 0
        %1615 = vmatprep.subr.bf16.mxu0 0
        %1616 = vmatpush2.bf16.xpose.msra.mxu0 0
        %1617 = vmatprep.subr.bf16.mxu0 0
        %1618 = vmatpush2.bf16.xpose.msra.mxu0 0
        %1619 = vmatprep.subr.bf16.mxu0 0
        %1620 = vmatpush2.bf16.xpose.msra.mxu0 0
        %1621 = vmatprep.subr.bf16.mxu0 0
        %1622 = vmatpush2.bf16.xpose.msra.mxu0 0
        %1623 = vmatprep.subr.bf16.mxu0 0
        %1624 = vmatpush2.bf16.xpose.msra.mxu0 0
        %1625 = vmatprep.subr.bf16.mxu0 0
        %1626 = vmatpush2.bf16.xpose.msra.mxu0 0
        %1627 = vmatprep.subr.bf16.mxu0 0
        %1628 = vmatpush2.bf16.xpose.msra.mxu0 0
        %1629 = vmatprep.mubr.bf16.mxu0 0
        %1630 = vmatmul.mubr.bf16.gmra.mxu0 %v1592
        %v1631 = vpop.f32.mrf.mxu0
        %v1632 = vadd.f32 0.0, %v1631
        %v1633 = vpop.f32.mrf.mxu0
        %v1634 = vpop.f32.mrf.mxu0
        %v1635 = vpop.f32.mrf.mxu0
        %1636 = vdwg.mxu0
        %v1637 = vmul.f32 %v1582, 0.35355338
        %v1638 = vmul.f32 %v1632, 0.35355338
        %v1639 = vsel %vm723, %v1637, -inf
        %1640 = vmax.xlane.f32.xlu0 %v1639
        %v1641 = vpop.xlane.xlu0 %1640
        %v1642 = vsel %vm723, %v1638, -inf
        %1643 = vmax.xlane.f32.xlu0 %v1642
        %v1644 = vpop.xlane.xlu0 %1643
        %v1645 = vsub.f32 %v1637, %v1641
        %v1646 = vsub.f32 %v1638, %v1644
        %v1647 = vmul.f32 %v1645, 1.442695
        %v1648 = vpow.pop %v1647
        %v1649 = vmul.f32 %v1646, 1.442695
        %v1650 = vpow.pop %v1649
        %v1651 = vsel %vm723, %v1648, 0.0
        %1652 = vadd.xlane.f32.xlu0 %v1651
        %v1653 = vpop.xlane.xlu0 %1652
        %v1654 = vsel %vm723, %v1650, 0.0
        %1655 = vadd.xlane.f32.xlu0 %v1654
        %v1656 = vpop.xlane.xlu0 %1655
        %v1657 = vrcp.pop %v1653
        %v1658 = vrcp.pop %v1656
        %v1659 = vmul.f32 %v1648, %v1657
        %v1660 = vmul.f32 %v1650, %v1658
        %v1661 = vpack.c.bf16 %v1659, %v1659
        %v1662 = vpack.c.bf16 %v1660, %v1660
        %1663 = vrot.lane.b32.xlu0 %v718, 40
        %v1664 = vpop.permute.xlu0 %1663
        %v1666 = vsel %vm723, %v1661, 0
        %v1669 = vsel %vm850, %v1664, 0
        %1671 = vmatprep.subr.bf16.mxu0 0
        %1672 = vmatpush1.bf16.msra.mxu0 0
        %1673 = vmatprep.subr.bf16.mxu0 0
        %1674 = vmatpush1.bf16.msra.mxu0 0
        %1675 = vmatprep.subr.bf16.mxu0 0
        %1676 = vmatpush1.bf16.msra.mxu0 0
        %1677 = vmatprep.subr.bf16.mxu0 0
        %1678 = vmatpush1.bf16.msra.mxu0 0
        %1679 = vmatprep.subr.bf16.mxu0 0
        %1680 = vmatpush1.bf16.msra.mxu0 0
        %1681 = vmatprep.subr.bf16.mxu0 0
        %1682 = vmatpush1.bf16.msra.mxu0 0
        %1683 = vmatprep.subr.bf16.mxu0 0
        %1684 = vmatpush1.bf16.msra.mxu0 0
        %1685 = vmatprep.subr.bf16.mxu0 0
        %1686 = vmatpush1.bf16.msra.mxu0 %v1669
        %1687 = vmatprep.subr.bf16.mxu0 0
        %1688 = vmatpush2.bf16.msra.mxu0 0
        %1689 = vmatprep.subr.bf16.mxu0 0
        %1690 = vmatpush2.bf16.msra.mxu0 0
        %1691 = vmatprep.subr.bf16.mxu0 0
        %1692 = vmatpush2.bf16.msra.mxu0 0
        %1693 = vmatprep.subr.bf16.mxu0 0
        %1694 = vmatpush2.bf16.msra.mxu0 0
        %1695 = vmatprep.subr.bf16.mxu0 0
        %1696 = vmatpush2.bf16.msra.mxu0 0
        %1697 = vmatprep.subr.bf16.mxu0 0
        %1698 = vmatpush2.bf16.msra.mxu0 0
        %1699 = vmatprep.subr.bf16.mxu0 0
        %1700 = vmatpush2.bf16.msra.mxu0 0
        %1701 = vmatprep.subr.bf16.mxu0 0
        %1702 = vmatpush2.bf16.msra.mxu0 0
        %1703 = vmatprep.mubr.bf16.mxu0 0
        %1704 = vmatmul.mubr.bf16.gmra.mxu0 %v1666
        %v1705 = vpop.f32.mrf.mxu0
        %v1706 = vadd.f32 0.0, %v1705
        %v1707 = vpop.f32.mrf.mxu0
        %v1708 = vpop.f32.mrf.mxu0
        %v1709 = vpop.f32.mrf.mxu0
        %1710 = vdwg.mxu0
        %1711 = vrot.lane.b32.xlu0 %v719, 40
        %v1712 = vpop.permute.xlu0 %1711
        %v1714 = vsel %vm723, %v1662, 0
        %v1717 = vsel %vm850, %v1712, 0
        %1719 = vmatprep.subr.bf16.mxu0 0
        %1720 = vmatpush1.bf16.msra.mxu0 0
        %1721 = vmatprep.subr.bf16.mxu0 0
        %1722 = vmatpush1.bf16.msra.mxu0 0
        %1723 = vmatprep.subr.bf16.mxu0 0
        %1724 = vmatpush1.bf16.msra.mxu0 0
        %1725 = vmatprep.subr.bf16.mxu0 0
        %1726 = vmatpush1.bf16.msra.mxu0 0
        %1727 = vmatprep.subr.bf16.mxu0 0
        %1728 = vmatpush1.bf16.msra.mxu0 0
        %1729 = vmatprep.subr.bf16.mxu0 0
        %1730 = vmatpush1.bf16.msra.mxu0 0
        %1731 = vmatprep.subr.bf16.mxu0 0
        %1732 = vmatpush1.bf16.msra.mxu0 0
        %1733 = vmatprep.subr.bf16.mxu0 0
        %1734 = vmatpush1.bf16.msra.mxu0 %v1717
        %1735 = vmatprep.subr.bf16.mxu0 0
        %1736 = vmatpush2.bf16.msra.mxu0 0
        %1737 = vmatprep.subr.bf16.mxu0 0
        %1738 = vmatpush2.bf16.msra.mxu0 0
        %1739 = vmatprep.subr.bf16.mxu0 0
        %1740 = vmatpush2.bf16.msra.mxu0 0
        %1741 = vmatprep.subr.bf16.mxu0 0
        %1742 = vmatpush2.bf16.msra.mxu0 0
        %1743 = vmatprep.subr.bf16.mxu0 0
        %1744 = vmatpush2.bf16.msra.mxu0 0
        %1745 = vmatprep.subr.bf16.mxu0 0
        %1746 = vmatpush2.bf16.msra.mxu0 0
        %1747 = vmatprep.subr.bf16.mxu0 0
        %1748 = vmatpush2.bf16.msra.mxu0 0
        %1749 = vmatprep.subr.bf16.mxu0 0
        %1750 = vmatpush2.bf16.msra.mxu0 0
        %1751 = vmatprep.mubr.bf16.mxu0 0
        %1752 = vmatmul.mubr.bf16.gmra.mxu0 %v1714
        %v1753 = vpop.f32.mrf.mxu0
        %v1754 = vadd.f32 0.0, %v1753
        %v1755 = vpop.f32.mrf.mxu0
        %v1756 = vpop.f32.mrf.mxu0
        %v1757 = vpop.f32.mrf.mxu0
        %1758 = vdwg.mxu0
        %v1759 = vpack.c.bf16 %v1754, %v1706
        %s1760 = scalar_lea.vmem %s553, 12
        %v1761 = vld [vmem:[%s1760] sm:$0xf]
        %v1763 = vsel %vm723, %v1759, 0
        %v1766 = vsel %vm850, %v1761, 0
        %1768 = vmatprep.subr.bf16.mxu0 0
        %1769 = vmatpush1.bf16.msra.mxu0 0
        %1770 = vmatprep.subr.bf16.mxu0 0
        %1771 = vmatpush1.bf16.msra.mxu0 0
        %1772 = vmatprep.subr.bf16.mxu0 0
        %1773 = vmatpush1.bf16.msra.mxu0 0
        %1774 = vmatprep.subr.bf16.mxu0 0
        %1775 = vmatpush1.bf16.msra.mxu0 0
        %1776 = vmatprep.subr.bf16.mxu0 0
        %1777 = vmatpush1.bf16.msra.mxu0 0
        %1778 = vmatprep.subr.bf16.mxu0 0
        %1779 = vmatpush1.bf16.msra.mxu0 0
        %1780 = vmatprep.subr.bf16.mxu0 0
        %1781 = vmatpush1.bf16.msra.mxu0 0
        %1782 = vmatprep.subr.bf16.mxu0 0
        %1783 = vmatpush1.bf16.msra.mxu0 %v1766
        %1784 = vmatprep.subr.bf16.mxu0 0
        %1785 = vmatpush2.bf16.msra.mxu0 0
        %1786 = vmatprep.subr.bf16.mxu0 0
        %1787 = vmatpush2.bf16.msra.mxu0 0
        %1788 = vmatprep.subr.bf16.mxu0 0
        %1789 = vmatpush2.bf16.msra.mxu0 0
        %1790 = vmatprep.subr.bf16.mxu0 0
        %1791 = vmatpush2.bf16.msra.mxu0 0
        %1792 = vmatprep.subr.bf16.mxu0 0
        %1793 = vmatpush2.bf16.msra.mxu0 0
        %1794 = vmatprep.subr.bf16.mxu0 0
        %1795 = vmatpush2.bf16.msra.mxu0 0
        %1796 = vmatprep.subr.bf16.mxu0 0
        %1797 = vmatpush2.bf16.msra.mxu0 0
        %1798 = vmatprep.subr.bf16.mxu0 0
        %1799 = vmatpush2.bf16.msra.mxu0 0
        %1800 = vmatprep.mubr.bf16.mxu0 0
        %1801 = vmatmul.mubr.bf16.gmra.mxu0 %v1763
        %v1802 = vpop.f32.mrf.mxu0
        %v1803 = vadd.f32 0.0, %v1802
        %v1804 = vpop.f32.mrf.mxu0
        %v1805 = vpop.f32.mrf.mxu0
        %v1806 = vadd.f32 0.0, %v1805
        %v1807 = vpop.f32.mrf.mxu0
        %1808 = vdwg.mxu0
        %v1809 = vadd.f32 %v1535, %v1803
        %v1810 = vadd.f32 %v1536, %v1806
        %v1811 = vlaneseq
        %v1812 = vshrl.u32 %v1811, 7
        %v1813 = vsub.s32 0, %v1812
        %v1814 = vrot.slane %v717, %v1813
        %v1815 = vadd.f32 %v1809, %v1814
        %v1816 = vadd.f32 %v1810, %v1814
        %v1817 = vadd.f32 %v646, %v1815
        %v1818 = vadd.f32 %v647, %v1816
        %v1819 = vsel %vm672, %v1817, 0.0
        %1820 = vadd.xlane.f32.xlu0 %v1819
        %v1821 = vpop.xlane.xlu0 %1820
        %v1822 = vsel %vm672, %v1818, 0.0
        %1823 = vadd.xlane.f32.xlu0 %v1822
        %v1824 = vpop.xlane.xlu0 %1823
        %v1825 = vrcp.pop 32.0
        %v1826 = vmul.f32 %v1821, %v1825
        %v1827 = vmul.f32 %v1824, %v1825
        %v1828 = vsub.f32 %v1817, %v1826
        %v1829 = vsub.f32 %v1818, %v1827
        %v1830 = vmul.f32 %v1828, %v1828
        %v1831 = vmul.f32 %v1829, %v1829
        %v1832 = vsel %vm672, %v1830, 0.0
        %1833 = vadd.xlane.f32.xlu0 %v1832
        %v1834 = vpop.xlane.xlu0 %1833
        %v1835 = vsel %vm672, %v1831, 0.0
        %1836 = vadd.xlane.f32.xlu0 %v1835
        %v1837 = vpop.xlane.xlu0 %1836
        %v1838 = vmul.f32 %v1834, %v1825
        %v1839 = vmul.f32 %v1837, %v1825
        %v1840 = vadd.f32 %v1838, 1e-05
        %v1841 = vadd.f32 %v1839, 1e-05
        %v1842 = vrsqrt.pop %v1840
        %v1843 = vrsqrt.pop %v1841
        %v1844 = vmul.f32 %v1828, %v1842
        %v1845 = vmul.f32 %v1829, %v1843
        %v1846 = vlaneseq
        %v1847 = vshrl.u32 %v1846, 7
        %v1848 = vsub.s32 1, %v1847
        %v1849 = vrot.slane %v717, %v1848
        %v1850 = vmul.f32 %v1844, %v1849
        %v1851 = vmul.f32 %v1845, %v1849
        %v1852 = vlaneseq
        %v1853 = vshrl.u32 %v1852, 7
        %v1854 = vsub.s32 2, %v1853
        %v1855 = vrot.slane %v717, %v1854
        %v1856 = vadd.f32 %v1850, %v1855
        %v1857 = vadd.f32 %v1851, %v1855
        %v1858 = vpack.c.bf16 %v1857, %v1856
        %v1859 = vld [vmem:[%s562] sm:$0xf]
        %v1860 = vld [vmem:[%s562 + $0x4] sm:$0xf]
        %v1861 = vld [vmem:[%s562 + $0x8] sm:$0xf]
        %v1862 = vld [vmem:[%s562 + $0xc] sm:$0xf]
        %v1863 = vld [vmem:[%s565] sm:$0x1]
        %v1865 = vlaneseq
        %v1866 = vshrl.u32 %v1865, 7
        %v1867 = vsub.s32 0, %v1866
        %v1868 = vrot.slane %v1863, %v1867
        %v1874 = vunpack.c.l.b16 %v1859
        %v1875 = vunpack.c.l.b16 %v1860
        %v1876 = vunpack.c.l.b16 %v1861
        %v1877 = vunpack.c.l.b16 %v1862
        %v1878 = vpack.c.b16 %v1875, %v1874
        %v1879 = vpack.c.b16 %v1877, %v1876
        %v1883 = vsel %vm672, %v1858, 0
        %1885 = vmatprep.subr.bf16.mxu0 0
        %1886 = vmatpush1.bf16.msra.mxu0 0
        %1887 = vmatprep.subr.bf16.mxu0 0
        %1888 = vmatpush1.bf16.msra.mxu0 0
        %1889 = vmatprep.subr.bf16.mxu0 0
        %1890 = vmatpush1.bf16.msra.mxu0 0
        %1891 = vmatprep.subr.bf16.mxu0 0
        %1892 = vmatpush1.bf16.msra.mxu0 0
        %1893 = vmatprep.subr.bf16.mxu0 0
        %1894 = vmatpush1.bf16.msra.mxu0 0
        %1895 = vmatprep.subr.bf16.mxu0 0
        %1896 = vmatpush1.bf16.msra.mxu0 0
        %1897 = vmatprep.subr.bf16.mxu0 0
        %1898 = vmatpush1.bf16.msra.mxu0 %v1879
        %1899 = vmatprep.subr.bf16.mxu0 0
        %1900 = vmatpush1.bf16.msra.mxu0 %v1878
        %1901 = vmatprep.subr.bf16.mxu0 0
        %1902 = vmatpush2.bf16.msra.mxu0 0
        %1903 = vmatprep.subr.bf16.mxu0 0
        %1904 = vmatpush2.bf16.msra.mxu0 0
        %1905 = vmatprep.subr.bf16.mxu0 0
        %1906 = vmatpush2.bf16.msra.mxu0 0
        %1907 = vmatprep.subr.bf16.mxu0 0
        %1908 = vmatpush2.bf16.msra.mxu0 0
        %1909 = vmatprep.subr.bf16.mxu0 0
        %1910 = vmatpush2.bf16.msra.mxu0 0
        %1911 = vmatprep.subr.bf16.mxu0 0
        %1912 = vmatpush2.bf16.msra.mxu0 0
        %1913 = vmatprep.subr.bf16.mxu0 0
        %1914 = vmatpush2.bf16.msra.mxu0 0
        %1915 = vmatprep.subr.bf16.mxu0 0
        %1916 = vmatpush2.bf16.msra.mxu0 0
        %1917 = vmatprep.mubr.bf16.mxu0 0
        %1918 = vmatmul.mubr.bf16.gmra.mxu0 %v1883
        %v1919 = vpop.f32.mrf.mxu0
        %v1920 = vadd.f32 %v1868, %v1919
        %v1921 = vpop.f32.mrf.mxu0
        %v1922 = vpop.f32.mrf.mxu0
        %v1923 = vadd.f32 %v1868, %v1922
        %v1924 = vpop.f32.mrf.mxu0
        %1925 = vdwg.mxu0
        %v1926 = vmax.f32 %v1920, 0.0
        %v1927 = vmax.f32 %v1923, 0.0
        %v1928 = vpack.c.bf16 %v1927, %v1926
        %v1929 = vld [vmem:[%s570] sm:$0xf]
        %v1930 = vld [vmem:[%s570 + $0x4] sm:$0xf]
        %v1931 = vld [vmem:[%s570 + $0x8] sm:$0xf]
        %v1932 = vld [vmem:[%s570 + $0xc] sm:$0xf]
        %v1933 = vld [vmem:[%s570 + $0x10] sm:$0xf]
        %v1934 = vld [vmem:[%s570 + $0x14] sm:$0xf]
        %v1935 = vld [vmem:[%s570 + $0x18] sm:$0xf]
        %v1936 = vld [vmem:[%s570 + $0x1c] sm:$0xf]
        %v1937 = vlaneseq
        %v1938 = vshrl.u32 %v1937, 7
        %v1939 = vsub.s32 3, %v1938
        %v1940 = vrot.slane %v717, %v1939
        %v1949 = vunpack.c.l.b16 %v1929
        %v1950 = vunpack.c.l.b16 %v1930
        %v1951 = vunpack.c.l.b16 %v1931
        %v1952 = vunpack.c.l.b16 %v1932
        %v1953 = vunpack.c.l.b16 %v1933
        %v1954 = vunpack.c.l.b16 %v1934
        %v1955 = vunpack.c.l.b16 %v1935
        %v1956 = vunpack.c.l.b16 %v1936
        %v1957 = vpack.c.b16 %v1950, %v1949
        %v1958 = vpack.c.b16 %v1952, %v1951
        %v1959 = vpack.c.b16 %v1954, %v1953
        %v1960 = vpack.c.b16 %v1956, %v1955
        %vm1965 = vcmask 523264
        %v1967 = vsel %vm1965, %v1928, 0
        %1969 = vmatprep.subr.bf16.mxu0 0
        %1970 = vmatpush1.bf16.msra.mxu0 0
        %1971 = vmatprep.subr.bf16.mxu0 0
        %1972 = vmatpush1.bf16.msra.mxu0 0
        %1973 = vmatprep.subr.bf16.mxu0 0
        %1974 = vmatpush1.bf16.msra.mxu0 0
        %1975 = vmatprep.subr.bf16.mxu0 0
        %1976 = vmatpush1.bf16.msra.mxu0 0
        %1977 = vmatprep.subr.bf16.mxu0 0
        %1978 = vmatpush1.bf16.msra.mxu0 %v1960
        %1979 = vmatprep.subr.bf16.mxu0 0
        %1980 = vmatpush1.bf16.msra.mxu0 %v1959
        %1981 = vmatprep.subr.bf16.mxu0 0
        %1982 = vmatpush1.bf16.msra.mxu0 %v1958
        %1983 = vmatprep.subr.bf16.mxu0 0
        %1984 = vmatpush1.bf16.msra.mxu0 %v1957
        %1985 = vmatprep.subr.bf16.mxu0 0
        %1986 = vmatpush2.bf16.msra.mxu0 0
        %1987 = vmatprep.subr.bf16.mxu0 0
        %1988 = vmatpush2.bf16.msra.mxu0 0
        %1989 = vmatprep.subr.bf16.mxu0 0
        %1990 = vmatpush2.bf16.msra.mxu0 0
        %1991 = vmatprep.subr.bf16.mxu0 0
        %1992 = vmatpush2.bf16.msra.mxu0 0
        %1993 = vmatprep.subr.bf16.mxu0 0
        %1994 = vmatpush2.bf16.msra.mxu0 0
        %1995 = vmatprep.subr.bf16.mxu0 0
        %1996 = vmatpush2.bf16.msra.mxu0 0
        %1997 = vmatprep.subr.bf16.mxu0 0
        %1998 = vmatpush2.bf16.msra.mxu0 0
        %1999 = vmatprep.subr.bf16.mxu0 0
        %2000 = vmatpush2.bf16.msra.mxu0 0
        %2001 = vmatprep.mubr.bf16.mxu0 0
        %2002 = vmatmul.mubr.bf16.gmra.mxu0 %v1967
        %v2003 = vpop.f32.mrf.mxu0
        %v2004 = vadd.f32 %v1940, %v2003
        %v2005 = vpop.f32.mrf.mxu0
        %v2006 = vpop.f32.mrf.mxu0
        %v2007 = vadd.f32 %v1940, %v2006
        %v2008 = vpop.f32.mrf.mxu0
        %2009 = vdwg.mxu0
        %v2010 = vadd.f32 %v1856, %v2004
        %v2011 = vadd.f32 %v1857, %v2007
        %v2012 = vsel %vm672, %v2010, 0.0
        %2013 = vadd.xlane.f32.xlu0 %v2012
        %v2014 = vpop.xlane.xlu0 %2013
        %v2015 = vsel %vm672, %v2011, 0.0
        %2016 = vadd.xlane.f32.xlu0 %v2015
        %v2017 = vpop.xlane.xlu0 %2016
        %v2018 = vmul.f32 %v2014, %v1825
        %v2019 = vmul.f32 %v2017, %v1825
        %v2020 = vsub.f32 %v2010, %v2018
        %v2021 = vsub.f32 %v2011, %v2019
        %v2022 = vmul.f32 %v2020, %v2020
        %v2023 = vmul.f32 %v2021, %v2021
        %v2024 = vsel %vm672, %v2022, 0.0
        %2025 = vadd.xlane.f32.xlu0 %v2024
        %v2026 = vpop.xlane.xlu0 %2025
        %v2027 = vsel %vm672, %v2023, 0.0
        %2028 = vadd.xlane.f32.xlu0 %v2027
        %v2029 = vpop.xlane.xlu0 %2028
        %v2030 = vmul.f32 %v2026, %v1825
        %v2031 = vmul.f32 %v2029, %v1825
        %v2032 = vadd.f32 %v2030, 1e-05
        %v2033 = vadd.f32 %v2031, 1e-05
        %v2034 = vrsqrt.pop %v2032
        %v2035 = vrsqrt.pop %v2033
        %v2036 = vmul.f32 %v2020, %v2034
        %v2037 = vmul.f32 %v2021, %v2035
        %v2038 = vlaneseq
        %v2039 = vshrl.u32 %v2038, 7
        %v2040 = vsub.s32 4, %v2039
        %v2041 = vrot.slane %v717, %v2040
        %v2042 = vmul.f32 %v2036, %v2041
        %v2043 = vmul.f32 %v2037, %v2041
        %v2044 = vlaneseq
        %v2045 = vshrl.u32 %v2044, 7
        %v2046 = vsub.s32 5, %v2045
        %v2047 = vrot.slane %v717, %v2046
        %v2048 = vadd.f32 %v2042, %v2047
        %v2049 = vadd.f32 %v2043, %v2047
        %2050 = vst.msk [vmem:[#allocation2] sm:$0xff] %vm672, %v2048
        %2051 = vst.msk [vmem:[#allocation2 + $0x8] sm:$0xff] %vm672, %v2049
        %p2052 = scmp.eq.s32.totalorder %s30, 1
        // Predicated region
        $region77: #{transformer_model_forward.1} parent=71 // pred_check
          %p2053 = pneg %p2052
        $region78: #{transformer_model_forward.1} parent=71 // pred_check_branch
          %2055 = sbr.rel (%p2053) target = $region80
        $region79: #{transformer_model_forward.1} parent=71 // pred_region
          %v2056 = vsel %vm672, %v2048, 0.0
          %v2057 = vrot.slane %v2056, 4
          %v2058 = vadd.f32 %v2056, %v2057
          %v2059 = vrot.slane %v2058, 2
          %v2060 = vadd.f32 %v2058, %v2059
          %v2061 = vrot.slane %v2060, 1
          %v2062 = vadd.f32 %v2060, %v2061
          %v2063 = vsel %vm672, %v2049, 0.0
          %v2064 = vrot.slane %v2063, 4
          %v2065 = vadd.f32 %v2063, %v2064
          %v2066 = vrot.slane %v2065, 2
          %v2067 = vadd.f32 %v2065, %v2066
          %v2068 = vrot.slane %v2067, 1
          %v2069 = vadd.f32 %v2067, %v2068
          %v2070 = vrcp.pop 8.0
          %v2071 = vmul.f32 %v2062, %v2070
          %v2072 = vmul.f32 %v2069, %v2070
          %v2073 = vpack.c.bf16 %v2071, %v2071
          %v2074 = vpack.c.bf16 %v2072, %v2072
          %v2075 = vld [vmem:[%s4] sm:$0xf]
          %v2076 = vld [vmem:[%s4 + $0x4] sm:$0xf]
          %v2077 = vld [vmem:[%s4 + $0x8] sm:$0xf]
          %v2078 = vld [vmem:[%s4 + $0xc] sm:$0xf]
          %v2079 = vld [vmem:[%s5] sm:$0x1]
          %v2081 = vlaneseq
          %v2082 = vshrl.u32 %v2081, 7
          %v2083 = vsub.s32 0, %v2082
          %v2084 = vrot.slane %v2079, %v2083
          %v2088 = vunpack.c.l.b16 %v2073
          %v2089 = vunpack.c.l.b16 %v2074
          %vm2090 = vcmask 1041409
          %v2091 = vsel %vm2090, %v2089, %v2088
          %v2092 = vpack.c.b16 %v2091, %v2091
          %v2097 = vunpack.c.l.b16 %v2075
          %v2098 = vunpack.c.l.b16 %v2076
          %v2099 = vunpack.c.l.b16 %v2077
          %v2100 = vunpack.c.l.b16 %v2078
          %v2101 = vpack.c.b16 %v2098, %v2097
          %v2102 = vpack.c.b16 %v2100, %v2099
          %v2106 = vsel %vm672, %v2092, 0
          %2108 = vmatprep.subr.bf16.mxu0 0
          %2109 = vmatpush1.bf16.msra.mxu0 0
          %2110 = vmatprep.subr.bf16.mxu0 0
          %2111 = vmatpush1.bf16.msra.mxu0 0
          %2112 = vmatprep.subr.bf16.mxu0 0
          %2113 = vmatpush1.bf16.msra.mxu0 0
          %2114 = vmatprep.subr.bf16.mxu0 0
          %2115 = vmatpush1.bf16.msra.mxu0 0
          %2116 = vmatprep.subr.bf16.mxu0 0
          %2117 = vmatpush1.bf16.msra.mxu0 0
          %2118 = vmatprep.subr.bf16.mxu0 0
          %2119 = vmatpush1.bf16.msra.mxu0 0
          %2120 = vmatprep.subr.bf16.mxu0 0
          %2121 = vmatpush1.bf16.msra.mxu0 %v2102
          %2122 = vmatprep.subr.bf16.mxu0 0
          %2123 = vmatpush1.bf16.msra.mxu0 %v2101
          %2124 = vmatprep.subr.bf16.mxu0 0
          %2125 = vmatpush2.bf16.msra.mxu0 0
          %2126 = vmatprep.subr.bf16.mxu0 0
          %2127 = vmatpush2.bf16.msra.mxu0 0
          %2128 = vmatprep.subr.bf16.mxu0 0
          %2129 = vmatpush2.bf16.msra.mxu0 0
          %2130 = vmatprep.subr.bf16.mxu0 0
          %2131 = vmatpush2.bf16.msra.mxu0 0
          %2132 = vmatprep.subr.bf16.mxu0 0
          %2133 = vmatpush2.bf16.msra.mxu0 0
          %2134 = vmatprep.subr.bf16.mxu0 0
          %2135 = vmatpush2.bf16.msra.mxu0 0
          %2136 = vmatprep.subr.bf16.mxu0 0
          %2137 = vmatpush2.bf16.msra.mxu0 0
          %2138 = vmatprep.subr.bf16.mxu0 0
          %2139 = vmatpush2.bf16.msra.mxu0 0
          %2140 = vmatprep.mubr.bf16.mxu0 0
          %2141 = vmatmul.mubr.bf16.gmra.mxu0 %v2106
          %v2142 = vpop.f32.mrf.mxu0
          %v2143 = vadd.f32 %v2084, %v2142
          %v2144 = vpop.f32.mrf.mxu0
          %v2145 = vpop.f32.mrf.mxu0
          %v2146 = vpop.f32.mrf.mxu0
          %2147 = vdwg.mxu0
          %vm2148 = vcmask 58368
          %2149 = vst.msk [vmem:[#allocation3] sm:$0x3] %vm2148, %v2143
        $region80: #{transformer_model_forward.1} parent=71 // pred_fallthru
          _
        // Predicated region
        $region81: #{transformer_model_forward.1} parent=71 // pred_check
          %p2150 = pneg %p368
        $region82: #{transformer_model_forward.1} parent=71 // pred_check_branch
          %2152 = sbr.rel (%p2150) target = $region84
        $region83: #{transformer_model_forward.1} parent=71 // pred_region
          %s2154 = ssub.s32 32, 32
          %2155 = vsyncadd [#allocation4], %s2154
          %s2156 = smul.addr %s29, 32
          %s2157 = scalar_lea.hbm %s13, %s2156
          %s2159 = sshll.u32 [#allocation3], 4
          %s2160 = int_to_ptr.vmem [resolvable:$true] %s2159
          %2162 = dma.vmem_to_hbm [thread:$0]  %s2160, 32, %s2157, [#allocation4]
        $region84: #{transformer_model_forward.1} parent=71 // pred_fallthru
          _
        // Predicated region
        $region85: #{transformer_model_forward.1} parent=71 // pred_check
          %p2163 = pneg %p368
        $region86: #{transformer_model_forward.1} parent=71 // pred_check_branch
          %2165 = sbr.rel (%p2163) target = $region88
        $region87: #{transformer_model_forward.1} parent=71 // pred_region
          %2166 = dma.done [#allocation4], 32
        $region88: #{transformer_model_forward.1} parent=71 // pred_fallthru
          _
      $region72: #{transformer_model_forward.1} parent=5 // pred_fallthru
        _
      %p2167 = scmp.le.s32.totalorder 2, %s20
      // Predicated region
      $region89: #{transformer_model_forward.1} parent=5 // pred_check
        %p2168 = pneg %p2167
      $region90: #{transformer_model_forward.1} parent=5 // pred_check_branch
        %2170 = sbr.rel (%p2168) target = $region92
      $region91: #{transformer_model_forward.1} parent=5 // pred_region
        %s2171 = ssub.s32 %s20, 2
      $region92: #{transformer_model_forward.1} parent=5 // pred_fallthru
        _
    $region6: #{transformer_model_forward.1} parent=1 // loop_footer
      %s24 = sadd.s32 1, %s20
    $region7: #{transformer_model_forward.1} parent=1 // loop_footer_branch
      %19 = sbr.rel target = $region3
    $region8: #{transformer_model_forward.1} parent=1 // loop_exit
      _
    %2172 = vsyncpa [#allocation4], 1
    %s2173 = scalar_lea.sflag [#allocation4], 1
    %2174 = vsyncpa %s2173, 1

</llo_original>
